<compile_context>
chip_gen: v7x
topology: tpu7x:2x2x1
jax: 0.10.0
libtpu: 0.0.40
codegen_flags: <defaults>
</compile_context>

<pallas_src>
import functools

import jax
import jax.numpy as jnp
from jax.experimental import pallas as pl
from jax.experimental.pallas import tpu as pltpu


# ---------------------------------------------------------------------------
# VMEM budget / tile picking
# ---------------------------------------------------------------------------

def _vmem_limit_bytes():
    """Scoped-VMEM budget: ~3/4 of physical VMEM, capped at 96 MiB (48 MiB on v7x)."""
    try:
        cap = int(pltpu.get_tpu_info().vmem_capacity_bytes)
        if cap >= 16 * 1024 * 1024:
            return min(cap * 3 // 4, 96 * 1024 * 1024)
    except Exception:
        pass
    return 48 * 1024 * 1024          # safe on v5e / v6e / v7x


def _pick_pool_tiles(B, C, HW, itemsize, vmem_limit):
    """Tiles for the [B, C, HW] pool: lane-dense channel tile, small batch tile."""
    tile_c = C
    for cand in (512, 256, 128):
        if C % cand == 0:
            tile_c = cand
            break
    if B % 8 == 0:
        tile_b = 16 if B % 16 == 0 else 8     # cap at 8-16: (tile_b, C) f32 acc stays in vregs
    else:
        tile_b = B                            # small / unaligned batch: take it whole
    budget = vmem_limit // 4                  # input double-buffer gets <= 1/4 of the budget
    while tile_b > 8 and tile_b % 2 == 0 and 2 * tile_b * tile_c * HW * itemsize > budget:
        tile_b //= 2
    while tile_c > 128 and tile_c % 2 == 0 and 2 * tile_b * tile_c * HW * itemsize > budget:
        tile_c //= 2
    return tile_b, tile_c


def _pick_class_tile(NC, C, B, w_itemsize, vmem_limit):
    """Class-dim tile for the classifier: big lane-dense weight tiles (bf16)."""
    if NC <= 128:
        return NC
    tile = min((NC // 128) * 128, 2048)
    budget = vmem_limit // 2
    while tile > 128 and 2 * tile * (C * w_itemsize + B * 4) > budget:
        tile = max(128, (tile // 2 // 128) * 128)
    return tile


# ---------------------------------------------------------------------------
# kernels
# ---------------------------------------------------------------------------

def _pool_kernel(x_ref, gf_ref, *, inv_hw):
    """Global average pool in native layout: [TB, TC, HW] -> [TB, TC] (f32)."""
    x = x_ref[...].astype(jnp.float32)
    gf_ref[...] = jnp.sum(x, axis=-1) * inv_hw


def _pool_bn_eval_kernel(x_ref, scale_ref, shift_ref, out_ref, *, inv_hw):
    """Fused pool + BatchNorm1d(eval) with precomputed scale/shift vectors."""
    gf = jnp.sum(x_ref[...].astype(jnp.float32), axis=-1) * inv_hw     # [TB, TC]
    out_ref[...] = gf * scale_ref[...] + shift_ref[...]


def _bn_classifier_kernel(gf_ref, scale_ref, shift_ref, w_ref, out_ref):
    """Fused BN-normalize + logits tile: ((gf*scale+shift) @ W_tile), f32 acc."""
    feat = gf_ref[...].astype(jnp.float32) * scale_ref[...] + shift_ref[...]
    out_ref[...] = jnp.dot(feat.astype(w_ref.dtype), w_ref[...],
                           preferred_element_type=jnp.float32)


# ---------------------------------------------------------------------------
# pallas_call wrappers
# ---------------------------------------------------------------------------

def _global_pool_call(x3, *, tile_b, tile_c, vmem_limit):
    B, C, HW = x3.shape
    return pl.pallas_call(
        functools.partial(_pool_kernel, inv_hw=1.0 / float(HW)),
        out_shape=jax.ShapeDtypeStruct((B, C), jnp.float32),
        grid=(pl.cdiv(B, tile_b), pl.cdiv(C, tile_c)),
        in_specs=[pl.BlockSpec((tile_b, tile_c, HW), lambda i, j: (i, j, 0))],
        out_specs=pl.BlockSpec((tile_b, tile_c), lambda i, j: (i, j)),
        compiler_params=pltpu.CompilerParams(
            dimension_semantics=("parallel", "parallel"),
            vmem_limit_bytes=vmem_limit),
    )(x3)


def _pool_bn_eval_call(x3, scale, shift, *, tile_b, tile_c, vmem_limit):
    B, C, HW = x3.shape
    vec = pl.BlockSpec((1, tile_c), lambda i, j: (0, j))
    return pl.pallas_call(
        functools.partial(_pool_bn_eval_kernel, inv_hw=1.0 / float(HW)),
        out_shape=jax.ShapeDtypeStruct((B, C), jnp.float32),
        grid=(pl.cdiv(B, tile_b), pl.cdiv(C, tile_c)),
        in_specs=[pl.BlockSpec((tile_b, tile_c, HW), lambda i, j: (i, j, 0)),
                  vec, vec],
        out_specs=pl.BlockSpec((tile_b, tile_c), lambda i, j: (i, j)),
        compiler_params=pltpu.CompilerParams(
            dimension_semantics=("parallel", "parallel"),
            vmem_limit_bytes=vmem_limit),
    )(x3, scale, shift)


def _bn_classifier_call(gf, scale, shift, w_t, *, tile_nc, vmem_limit):
    B, C = gf.shape
    NC = w_t.shape[1]
    vec = pl.BlockSpec((1, C), lambda j: (0, 0))
    return pl.pallas_call(
        _bn_classifier_kernel,
        out_shape=jax.ShapeDtypeStruct((B, NC), jnp.float32),
        grid=(pl.cdiv(NC, tile_nc),),
        in_specs=[pl.BlockSpec((B, C), lambda j: (0, 0)),      # resident across class tiles
                  vec, vec,
                  pl.BlockSpec((C, tile_nc), lambda j: (0, j))],
        out_specs=pl.BlockSpec((B, tile_nc), lambda j: (0, j)),
        compiler_params=pltpu.CompilerParams(
            dimension_semantics=("parallel",),
            vmem_limit_bytes=vmem_limit),
    )(gf, scale, shift, w_t)


# ---------------------------------------------------------------------------
# forward (Backbone head) + parameter init
# ---------------------------------------------------------------------------

def backbone_head_forward(feat_map, params, *, training=False, neck="bnneck",
                          neck_feat="before", eps=1e-5, momentum=0.1,
                          return_updated_stats=False):
    """Backbone.forward from the trunk output onward.

    feat_map: [B, C, H, W] output of the (ResNet50) trunk, f32 or bf16.
    Returns:
      eval  : feat (neck_feat=='after') or global_feat ('before'), f32
      train : (cls_score[f32], global_feat[f32])  [+ updated BN running stats if requested]
    """
    # TODO(synk): the ResNet50 trunk (self.base) is not part of this kernel; the
    # kernel implements avg-pool -> bnneck BN -> classifier on the trunk's output.
    B, C, H, W = feat_map.shape
    HW = H * W
    x3 = feat_map.reshape(B, C, HW)        # contiguous flatten, no HBM relayout
    vmem_limit = _vmem_limit_bytes()
    tile_b, tile_c = _pick_pool_tiles(B, C, HW, x3.dtype.itemsize, vmem_limit)

    if not training:
        if neck == "bnneck" and neck_feat == "after":
            rv = params["bn_rv"].astype(jnp.float32)
            scale = params["bn_gamma"].astype(jnp.float32) * jax.lax.rsqrt(rv + eps)
            shift = params["bn_beta"].astype(jnp.float32) \
                - params["bn_rm"].astype(jnp.float32) * scale
            return _pool_bn_eval_call(x3, scale, shift,
                                      tile_b=tile_b, tile_c=tile_c, vmem_limit=vmem_limit)
        # neck_feat == 'before' (or neck == 'no'): pre-BN pooled feature; the
        # classifier weights are never loaded and no dead logits are written.
        return _global_pool_call(x3, tile_b=tile_b, tile_c=tile_c, vmem_limit=vmem_limit)

    # ---- training: (cls_score, global_feat) ----
    global_feat = _global_pool_call(x3, tile_b=tile_b, tile_c=tile_c, vmem_limit=vmem_limit)

    if neck == "bnneck":
        # Tiny [B, C] batch-stat reduction; left to XLA (cheap vs. the pool / classifier).
        bmean = jnp.mean(global_feat, axis=0, keepdims=True)
        bvar = jnp.mean(jnp.square(global_feat - bmean), axis=0, keepdims=True)  # biased (torch norm)
        scale = params["bn_gamma"].astype(jnp.float32) * jax.lax.rsqrt(bvar + eps)
        shift = params["bn_beta"].astype(jnp.float32) - bmean * scale
    else:
        bmean = bvar = None
        scale = jnp.ones((1, C), jnp.float32)
        shift = jnp.zeros((1, C), jnp.float32)

    # TODO(synk): cfg.MODEL.COS_LAYER (ArcFace) branch is not implemented.
    w_t = params["classifier_w"]                                   # [C, NC], bf16
    tile_nc = _pick_class_tile(w_t.shape[1], C, B, w_t.dtype.itemsize, vmem_limit)
    cls_score = _bn_classifier_call(global_feat, scale, shift, w_t,
                                    tile_nc=tile_nc, vmem_limit=vmem_limit)

    if return_updated_stats and neck == "bnneck":
        # NOTE: for B == 1 torch's unbiased running_var update is NaN/inf; we clamp the divisor.
        n = float(B)
        unbiased = bvar * (n / max(n - 1.0, 1.0))
        new_stats = {
            "bn_rm": ((1.0 - momentum) * params["bn_rm"] + momentum * bmean
                      ).astype(params["bn_rm"].dtype),
            "bn_rv": ((1.0 - momentum) * params["bn_rv"] + momentum * unbiased
                      ).astype(params["bn_rv"].dtype),
        }
        return (cls_score, global_feat), new_stats
    return cls_score, global_feat


def init_backbone_head_params(key, in_planes, num_classes):
    """Matches Backbone.__init__ init: classifier ~ N(0, 0.001) no bias; BN gamma=1, beta=0.

    The classifier weight is stored bf16 / [in_planes, num_classes] for the MXU path.
    """
    w = jax.random.normal(key, (num_classes, in_planes), jnp.float32) * 0.001
    return {
        "classifier_w": jnp.transpose(w).astype(jnp.bfloat16),       # [in_planes, num_classes]
        "bn_gamma": jnp.ones((1, in_planes), jnp.float32),
        "bn_beta": jnp.zeros((1, in_planes), jnp.float32),           # grad frozen in torch; still used
        "bn_rm": jnp.zeros((1, in_planes), jnp.float32),
        "bn_rv": jnp.ones((1, in_planes), jnp.float32),
    }


# ---------------------------------------------------------------------------
# demo / self-check
# ---------------------------------------------------------------------------

if __name__ == "__main__":
    import numpy as np

    key = jax.random.PRNGKey(0)
    kx, kp = jax.random.split(key)

    # Small but lane/sublane-aligned shapes (real model: C=2048, num_classes ~ thousands).
    B, C, H, W = 8, 256, 4, 4
    NUM_CLASSES = 256
    EPS = 1e-5

    feat_map = jax.random.normal(kx, (B, C, H, W), jnp.float32)
    params = init_backbone_head_params(kp, in_planes=C, num_classes=NUM_CLASSES)

    # eval, neck_feat='before' -> pre-BN pooled feature
    gf = backbone_head_forward(feat_map, params, training=False, neck_feat="before")
    gf = jax.block_until_ready(gf)
    assert gf.shape == (B, C)

    # eval, neck_feat='after' -> BN(bnneck) feature
    feat_after = backbone_head_forward(feat_map, params, training=False, neck_feat="after")
    feat_after = jax.block_until_ready(feat_after)
    assert feat_after.shape == (B, C)

    # training -> (cls_score, global_feat), plus updated BN running stats
    (cls_score, gf_tr), new_stats = backbone_head_forward(
        feat_map, params, training=True, return_updated_stats=True)
    cls_score = jax.block_until_ready(cls_score)
    gf_tr = jax.block_until_ready(gf_tr)
    assert cls_score.shape == (B, NUM_CLASSES) and gf_tr.shape == (B, C)
    assert new_stats["bn_rm"].shape == (1, C) and new_stats["bn_rv"].shape == (1, C)

    # bf16 trunk output path (what the real pipeline feeds): half the pool's HBM read.
    gf_bf16 = backbone_head_forward(feat_map.astype(jnp.bfloat16), params,
                                    training=False, neck_feat="before")
    gf_bf16 = jax.block_until_ready(gf_bf16)
    assert gf_bf16.shape == (B, C) and gf_bf16.dtype == jnp.float32

    # ---- pure-JAX reference checks ----
    gf_ref = jnp.mean(feat_map.astype(jnp.float32), axis=(2, 3))                  # [B, C]
    np.testing.assert_allclose(np.asarray(gf), np.asarray(gf_ref), rtol=1e-5, atol=1e-5)
    np.testing.assert_allclose(np.asarray(gf_tr), np.asarray(gf_ref), rtol=1e-5, atol=1e-5)
    np.testing.assert_allclose(np.asarray(gf_bf16), np.asarray(gf_ref), rtol=2e-2, atol=2e-2)

    feat_after_ref = (gf_ref - params["bn_rm"]) * jax.lax.rsqrt(params["bn_rv"] + EPS) \
        * params["bn_gamma"] + params["bn_beta"]
    np.testing.assert_allclose(np.asarray(feat_after), np.asarray(feat_after_ref),
                               rtol=1e-4, atol=1e-4)

    mean = jnp.mean(gf_ref, axis=0, keepdims=True)
    var = jnp.mean((gf_ref - mean) ** 2, axis=0, keepdims=True)
    feat_train_ref = (gf_ref - mean) * jax.lax.rsqrt(var + EPS) \
        * params["bn_gamma"] + params["bn_beta"]
    logits_ref = feat_train_ref @ params["classifier_w"].astype(jnp.float32)
    np.testing.assert_allclose(np.asarray(cls_score), np.asarray(logits_ref),
                               rtol=2e-2, atol=2e-3)

    print("KERNEL_OK")
</pallas_src>

<mosaic_0001>
module attributes {stable_mosaic.version = 11 : i64} {
  func.func @_pool_kernel(%arg0: i32, %arg1: i32, %arg2: memref<8x256x16xf32, #tpu.memory_space<vmem>>, %arg3: memref<8x256xf32, #tpu.memory_space<vmem>>) attributes {dimension_semantics = [#tpu.dimension_semantics<parallel>, #tpu.dimension_semantics<parallel>], iteration_bounds = array<i64: 1, 1>, scalar_prefetch = 0 : i64, scratch_operands = 0 : i64, tpu.core_type = #tpu.core_type<tc>, window_params = [{transform_indices = @transform_0, window_bounds = array<i64: 8, 256, 16>}, {transform_indices = @transform_1, window_bounds = array<i64: 8, 256>}]} {
    %c0 = arith.constant 0 : index
    %c0_0 = arith.constant 0 : index
    %c0_1 = arith.constant 0 : index
    %0 = vector.load %arg2[%c0, %c0_0, %c0_1] : memref<8x256x16xf32, #tpu.memory_space<vmem>>, vector<8x256x16xf32>
    %cst = arith.constant dense<0.000000e+00> : vector<8x256xf32>
    %1 = vector.multi_reduction <add>, %0, %cst [2] : vector<8x256x16xf32> to vector<8x256xf32>
    %cst_2 = arith.constant 6.250000e-02 : f32
    %2 = vector.broadcast %cst_2 : f32 to vector<8x256xf32>
    %3 = arith.mulf %1, %2 : vector<8x256xf32>
    %c0_3 = arith.constant 0 : index
    %c0_4 = arith.constant 0 : index
    %4 = vector.load %arg3[%c0_3, %c0_4] : memref<8x256xf32, #tpu.memory_space<vmem>>, vector<8x256xf32>
    tpu.vector_store %arg3[%c0_3, %c0_4], %3 {strides = array<i32>} : memref<8x256xf32, #tpu.memory_space<vmem>>, vector<8x256xf32>,
    return
  }
  func.func @transform_0(%arg0: i32, %arg1: i32) -> (i32, i32, i32) {
    %c0_i32 = arith.constant 0 : i32
    %c0_i32_0 = arith.constant 0 : i32
    return %arg0, %arg1, %c0_i32 : i32, i32, i32
  }
  func.func @transform_1(%arg0: i32, %arg1: i32) -> (i32, i32) {
    %c0_i32 = arith.constant 0 : i32
    return %arg0, %arg1 : i32, i32
  }
}

</mosaic_0001>

<llo_original>
// kernel: tpu_custom_call.1
$region0: #{tpu_custom_call.1}
  #allocation0 [shape = 'u32[]', space=smem, size = 0x4, offset = 0x4, fixed_abs, tag = 'smem constant byte address 0x4 - core index']
  #allocation1 [shape = 'u32[144,128]{1,0:T(1,128)}', space=vmem, size = 0x12000, scoped, tag = 'internal scratch']
  %s0 = inlined_call_operand.vmem [shape: f32[8,256,16], index: 0, kind: input, shape index: {}]
  %s1 = inlined_call_operand.hbm [shape: f32[8,256], index: 1, kind: output, shape index: {}]
  %s2 = sld [smem:[#allocation0]]
  $region14: #{tpu_custom_call.1} parent=0
    _
  %s4 = ssub.s32 1, %s2
  %s5 = scalar_select 0, %s4, %s2
  $region1: #{tpu_custom_call.1} parent=0
    #allocation2 [shape = 'u8[8192]{0}', space=vmem, size = 0x2000, scoped, tag = 'output window, operand 0, single buffered']
    #allocation3 [shape = 's32[1]{0}', space=sflag, size = 0x4, scoped, tag = 'scoped memory for tpu_custom_call.1']
    %6 = vsyncpa [#allocation3], 0
    // Predicated region
    $region2: #{tpu_custom_call.1} parent=1 // pred_check
      _
    $region3: #{tpu_custom_call.1} parent=1 // pred_check_branch
      %8 = sbr.rel (0) target = $region5
    $region4: #{tpu_custom_call.1} parent=1 // pred_region
      _
    $region5: #{tpu_custom_call.1} parent=1 // pred_fallthru
      _
    %v9 = vld [vmem:[%s0] sm:$0xff]
    %v10 = vld [vmem:[%s0 + $0x8] sm:$0xff]
    %v11 = vld [vmem:[%s0 + $0x10] sm:$0xff]
    %v12 = vld [vmem:[%s0 + $0x18] sm:$0xff]
    %v13 = vld [vmem:[%s0 + $0x20] sm:$0xff]
    %v14 = vld [vmem:[%s0 + $0x28] sm:$0xff]
    %v15 = vld [vmem:[%s0 + $0x30] sm:$0xff]
    %v16 = vld [vmem:[%s0 + $0x38] sm:$0xff]
    %v17 = vld [vmem:[%s0 + $0x40] sm:$0xff]
    %v18 = vld [vmem:[%s0 + $0x48] sm:$0xff]
    %v19 = vld [vmem:[%s0 + $0x50] sm:$0xff]
    %v20 = vld [vmem:[%s0 + $0x58] sm:$0xff]
    %v21 = vld [vmem:[%s0 + $0x60] sm:$0xff]
    %v22 = vld [vmem:[%s0 + $0x68] sm:$0xff]
    %v23 = vld [vmem:[%s0 + $0x70] sm:$0xff]
    %v24 = vld [vmem:[%s0 + $0x78] sm:$0xff]
    %v25 = vld [vmem:[%s0 + $0x80] sm:$0xff]
    %v26 = vld [vmem:[%s0 + $0x88] sm:$0xff]
    %v27 = vld [vmem:[%s0 + $0x90] sm:$0xff]
    %v28 = vld [vmem:[%s0 + $0x98] sm:$0xff]
    %v29 = vld [vmem:[%s0 + $0xa0] sm:$0xff]
    %v30 = vld [vmem:[%s0 + $0xa8] sm:$0xff]
    %v31 = vld [vmem:[%s0 + $0xb0] sm:$0xff]
    %v32 = vld [vmem:[%s0 + $0xb8] sm:$0xff]
    %v33 = vld [vmem:[%s0 + $0xc0] sm:$0xff]
    %v34 = vld [vmem:[%s0 + $0xc8] sm:$0xff]
    %v35 = vld [vmem:[%s0 + $0xd0] sm:$0xff]
    %v36 = vld [vmem:[%s0 + $0xd8] sm:$0xff]
    %v37 = vld [vmem:[%s0 + $0xe0] sm:$0xff]
    %v38 = vld [vmem:[%s0 + $0xe8] sm:$0xff]
    %v39 = vld [vmem:[%s0 + $0xf0] sm:$0xff]
    %v40 = vld [vmem:[%s0 + $0xf8] sm:$0xff]
    %v41 = vld [vmem:[%s0 + $0x100] sm:$0xff]
    %v42 = vld [vmem:[%s0 + $0x108] sm:$0xff]
    %v43 = vld [vmem:[%s0 + $0x110] sm:$0xff]
    %v44 = vld [vmem:[%s0 + $0x118] sm:$0xff]
    %v45 = vld [vmem:[%s0 + $0x120] sm:$0xff]
    %v46 = vld [vmem:[%s0 + $0x128] sm:$0xff]
    %v47 = vld [vmem:[%s0 + $0x130] sm:$0xff]
    %v48 = vld [vmem:[%s0 + $0x138] sm:$0xff]
    %v49 = vld [vmem:[%s0 + $0x140] sm:$0xff]
    %v50 = vld [vmem:[%s0 + $0x148] sm:$0xff]
    %v51 = vld [vmem:[%s0 + $0x150] sm:$0xff]
    %v52 = vld [vmem:[%s0 + $0x158] sm:$0xff]
    %v53 = vld [vmem:[%s0 + $0x160] sm:$0xff]
    %v54 = vld [vmem:[%s0 + $0x168] sm:$0xff]
    %v55 = vld [vmem:[%s0 + $0x170] sm:$0xff]
    %v56 = vld [vmem:[%s0 + $0x178] sm:$0xff]
    %v57 = vld [vmem:[%s0 + $0x180] sm:$0xff]
    %v58 = vld [vmem:[%s0 + $0x188] sm:$0xff]
    %v59 = vld [vmem:[%s0 + $0x190] sm:$0xff]
    %v60 = vld [vmem:[%s0 + $0x198] sm:$0xff]
    %v61 = vld [vmem:[%s0 + $0x1a0] sm:$0xff]
    %v62 = vld [vmem:[%s0 + $0x1a8] sm:$0xff]
    %v63 = vld [vmem:[%s0 + $0x1b0] sm:$0xff]
    %v64 = vld [vmem:[%s0 + $0x1b8] sm:$0xff]
    %v65 = vld [vmem:[%s0 + $0x1c0] sm:$0xff]
    %v66 = vld [vmem:[%s0 + $0x1c8] sm:$0xff]
    %v67 = vld [vmem:[%s0 + $0x1d0] sm:$0xff]
    %v68 = vld [vmem:[%s0 + $0x1d8] sm:$0xff]
    %v69 = vld [vmem:[%s0 + $0x1e0] sm:$0xff]
    %v70 = vld [vmem:[%s0 + $0x1e8] sm:$0xff]
    %v71 = vld [vmem:[%s0 + $0x1f0] sm:$0xff]
    %v72 = vld [vmem:[%s0 + $0x1f8] sm:$0xff]
    %v73 = vld [vmem:[%s0 + $0x200] sm:$0xff]
    %v74 = vld [vmem:[%s0 + $0x208] sm:$0xff]
    %v75 = vld [vmem:[%s0 + $0x210] sm:$0xff]
    %v76 = vld [vmem:[%s0 + $0x218] sm:$0xff]
    %v77 = vld [vmem:[%s0 + $0x220] sm:$0xff]
    %v78 = vld [vmem:[%s0 + $0x228] sm:$0xff]
    %v79 = vld [vmem:[%s0 + $0x230] sm:$0xff]
    %v80 = vld [vmem:[%s0 + $0x238] sm:$0xff]
    %v81 = vld [vmem:[%s0 + $0x240] sm:$0xff]
    %v82 = vld [vmem:[%s0 + $0x248] sm:$0xff]
    %v83 = vld [vmem:[%s0 + $0x250] sm:$0xff]
    %v84 = vld [vmem:[%s0 + $0x258] sm:$0xff]
    %v85 = vld [vmem:[%s0 + $0x260] sm:$0xff]
    %v86 = vld [vmem:[%s0 + $0x268] sm:$0xff]
    %v87 = vld [vmem:[%s0 + $0x270] sm:$0xff]
    %v88 = vld [vmem:[%s0 + $0x278] sm:$0xff]
    %v89 = vld [vmem:[%s0 + $0x280] sm:$0xff]
    %v90 = vld [vmem:[%s0 + $0x288] sm:$0xff]
    %v91 = vld [vmem:[%s0 + $0x290] sm:$0xff]
    %v92 = vld [vmem:[%s0 + $0x298] sm:$0xff]
    %v93 = vld [vmem:[%s0 + $0x2a0] sm:$0xff]
    %v94 = vld [vmem:[%s0 + $0x2a8] sm:$0xff]
    %v95 = vld [vmem:[%s0 + $0x2b0] sm:$0xff]
    %v96 = vld [vmem:[%s0 + $0x2b8] sm:$0xff]
    %v97 = vld [vmem:[%s0 + $0x2c0] sm:$0xff]
    %v98 = vld [vmem:[%s0 + $0x2c8] sm:$0xff]
    %v99 = vld [vmem:[%s0 + $0x2d0] sm:$0xff]
    %v100 = vld [vmem:[%s0 + $0x2d8] sm:$0xff]
    %v101 = vld [vmem:[%s0 + $0x2e0] sm:$0xff]
    %v102 = vld [vmem:[%s0 + $0x2e8] sm:$0xff]
    %v103 = vld [vmem:[%s0 + $0x2f0] sm:$0xff]
    %v104 = vld [vmem:[%s0 + $0x2f8] sm:$0xff]
    %v105 = vld [vmem:[%s0 + $0x300] sm:$0xff]
    %v106 = vld [vmem:[%s0 + $0x308] sm:$0xff]
    %v107 = vld [vmem:[%s0 + $0x310] sm:$0xff]
    %v108 = vld [vmem:[%s0 + $0x318] sm:$0xff]
    %v109 = vld [vmem:[%s0 + $0x320] sm:$0xff]
    %v110 = vld [vmem:[%s0 + $0x328] sm:$0xff]
    %v111 = vld [vmem:[%s0 + $0x330] sm:$0xff]
    %v112 = vld [vmem:[%s0 + $0x338] sm:$0xff]
    %v113 = vld [vmem:[%s0 + $0x340] sm:$0xff]
    %v114 = vld [vmem:[%s0 + $0x348] sm:$0xff]
    %v115 = vld [vmem:[%s0 + $0x350] sm:$0xff]
    %v116 = vld [vmem:[%s0 + $0x358] sm:$0xff]
    %v117 = vld [vmem:[%s0 + $0x360] sm:$0xff]
    %v118 = vld [vmem:[%s0 + $0x368] sm:$0xff]
    %v119 = vld [vmem:[%s0 + $0x370] sm:$0xff]
    %v120 = vld [vmem:[%s0 + $0x378] sm:$0xff]
    %v121 = vld [vmem:[%s0 + $0x380] sm:$0xff]
    %v122 = vld [vmem:[%s0 + $0x388] sm:$0xff]
    %v123 = vld [vmem:[%s0 + $0x390] sm:$0xff]
    %v124 = vld [vmem:[%s0 + $0x398] sm:$0xff]
    %v125 = vld [vmem:[%s0 + $0x3a0] sm:$0xff]
    %v126 = vld [vmem:[%s0 + $0x3a8] sm:$0xff]
    %v127 = vld [vmem:[%s0 + $0x3b0] sm:$0xff]
    %v128 = vld [vmem:[%s0 + $0x3b8] sm:$0xff]
    %v129 = vld [vmem:[%s0 + $0x3c0] sm:$0xff]
    %v130 = vld [vmem:[%s0 + $0x3c8] sm:$0xff]
    %v131 = vld [vmem:[%s0 + $0x3d0] sm:$0xff]
    %v132 = vld [vmem:[%s0 + $0x3d8] sm:$0xff]
    %v133 = vld [vmem:[%s0 + $0x3e0] sm:$0xff]
    %v134 = vld [vmem:[%s0 + $0x3e8] sm:$0xff]
    %v135 = vld [vmem:[%s0 + $0x3f0] sm:$0xff]
    %v136 = vld [vmem:[%s0 + $0x3f8] sm:$0xff]
    %v137 = vld [vmem:[%s0 + $0x400] sm:$0xff]
    %v138 = vld [vmem:[%s0 + $0x408] sm:$0xff]
    %v139 = vld [vmem:[%s0 + $0x410] sm:$0xff]
    %v140 = vld [vmem:[%s0 + $0x418] sm:$0xff]
    %v141 = vld [vmem:[%s0 + $0x420] sm:$0xff]
    %v142 = vld [vmem:[%s0 + $0x428] sm:$0xff]
    %v143 = vld [vmem:[%s0 + $0x430] sm:$0xff]
    %v144 = vld [vmem:[%s0 + $0x438] sm:$0xff]
    %v145 = vld [vmem:[%s0 + $0x440] sm:$0xff]
    %v146 = vld [vmem:[%s0 + $0x448] sm:$0xff]
    %v147 = vld [vmem:[%s0 + $0x450] sm:$0xff]
    %v148 = vld [vmem:[%s0 + $0x458] sm:$0xff]
    %v149 = vld [vmem:[%s0 + $0x460] sm:$0xff]
    %v150 = vld [vmem:[%s0 + $0x468] sm:$0xff]
    %v151 = vld [vmem:[%s0 + $0x470] sm:$0xff]
    %v152 = vld [vmem:[%s0 + $0x478] sm:$0xff]
    %v153 = vld [vmem:[%s0 + $0x480] sm:$0xff]
    %v154 = vld [vmem:[%s0 + $0x488] sm:$0xff]
    %v155 = vld [vmem:[%s0 + $0x490] sm:$0xff]
    %v156 = vld [vmem:[%s0 + $0x498] sm:$0xff]
    %v157 = vld [vmem:[%s0 + $0x4a0] sm:$0xff]
    %v158 = vld [vmem:[%s0 + $0x4a8] sm:$0xff]
    %v159 = vld [vmem:[%s0 + $0x4b0] sm:$0xff]
    %v160 = vld [vmem:[%s0 + $0x4b8] sm:$0xff]
    %v161 = vld [vmem:[%s0 + $0x4c0] sm:$0xff]
    %v162 = vld [vmem:[%s0 + $0x4c8] sm:$0xff]
    %v163 = vld [vmem:[%s0 + $0x4d0] sm:$0xff]
    %v164 = vld [vmem:[%s0 + $0x4d8] sm:$0xff]
    %v165 = vld [vmem:[%s0 + $0x4e0] sm:$0xff]
    %v166 = vld [vmem:[%s0 + $0x4e8] sm:$0xff]
    %v167 = vld [vmem:[%s0 + $0x4f0] sm:$0xff]
    %v168 = vld [vmem:[%s0 + $0x4f8] sm:$0xff]
    %v169 = vld [vmem:[%s0 + $0x500] sm:$0xff]
    %v170 = vld [vmem:[%s0 + $0x508] sm:$0xff]
    %v171 = vld [vmem:[%s0 + $0x510] sm:$0xff]
    %v172 = vld [vmem:[%s0 + $0x518] sm:$0xff]
    %v173 = vld [vmem:[%s0 + $0x520] sm:$0xff]
    %v174 = vld [vmem:[%s0 + $0x528] sm:$0xff]
    %v175 = vld [vmem:[%s0 + $0x530] sm:$0xff]
    %v176 = vld [vmem:[%s0 + $0x538] sm:$0xff]
    %v177 = vld [vmem:[%s0 + $0x540] sm:$0xff]
    %v178 = vld [vmem:[%s0 + $0x548] sm:$0xff]
    %v179 = vld [vmem:[%s0 + $0x550] sm:$0xff]
    %v180 = vld [vmem:[%s0 + $0x558] sm:$0xff]
    %v181 = vld [vmem:[%s0 + $0x560] sm:$0xff]
    %v182 = vld [vmem:[%s0 + $0x568] sm:$0xff]
    %v183 = vld [vmem:[%s0 + $0x570] sm:$0xff]
    %v184 = vld [vmem:[%s0 + $0x578] sm:$0xff]
    %v185 = vld [vmem:[%s0 + $0x580] sm:$0xff]
    %v186 = vld [vmem:[%s0 + $0x588] sm:$0xff]
    %v187 = vld [vmem:[%s0 + $0x590] sm:$0xff]
    %v188 = vld [vmem:[%s0 + $0x598] sm:$0xff]
    %v189 = vld [vmem:[%s0 + $0x5a0] sm:$0xff]
    %v190 = vld [vmem:[%s0 + $0x5a8] sm:$0xff]
    %v191 = vld [vmem:[%s0 + $0x5b0] sm:$0xff]
    %v192 = vld [vmem:[%s0 + $0x5b8] sm:$0xff]
    %v193 = vld [vmem:[%s0 + $0x5c0] sm:$0xff]
    %v194 = vld [vmem:[%s0 + $0x5c8] sm:$0xff]
    %v195 = vld [vmem:[%s0 + $0x5d0] sm:$0xff]
    %v196 = vld [vmem:[%s0 + $0x5d8] sm:$0xff]
    %v197 = vld [vmem:[%s0 + $0x5e0] sm:$0xff]
    %v198 = vld [vmem:[%s0 + $0x5e8] sm:$0xff]
    %v199 = vld [vmem:[%s0 + $0x5f0] sm:$0xff]
    %v200 = vld [vmem:[%s0 + $0x5f8] sm:$0xff]
    %v201 = vld [vmem:[%s0 + $0x600] sm:$0xff]
    %v202 = vld [vmem:[%s0 + $0x608] sm:$0xff]
    %v203 = vld [vmem:[%s0 + $0x610] sm:$0xff]
    %v204 = vld [vmem:[%s0 + $0x618] sm:$0xff]
    %v205 = vld [vmem:[%s0 + $0x620] sm:$0xff]
    %v206 = vld [vmem:[%s0 + $0x628] sm:$0xff]
    %v207 = vld [vmem:[%s0 + $0x630] sm:$0xff]
    %v208 = vld [vmem:[%s0 + $0x638] sm:$0xff]
    %v209 = vld [vmem:[%s0 + $0x640] sm:$0xff]
    %v210 = vld [vmem:[%s0 + $0x648] sm:$0xff]
    %v211 = vld [vmem:[%s0 + $0x650] sm:$0xff]
    %v212 = vld [vmem:[%s0 + $0x658] sm:$0xff]
    %v213 = vld [vmem:[%s0 + $0x660] sm:$0xff]
    %v214 = vld [vmem:[%s0 + $0x668] sm:$0xff]
    %v215 = vld [vmem:[%s0 + $0x670] sm:$0xff]
    %v216 = vld [vmem:[%s0 + $0x678] sm:$0xff]
    %v217 = vld [vmem:[%s0 + $0x680] sm:$0xff]
    %v218 = vld [vmem:[%s0 + $0x688] sm:$0xff]
    %v219 = vld [vmem:[%s0 + $0x690] sm:$0xff]
    %v220 = vld [vmem:[%s0 + $0x698] sm:$0xff]
    %v221 = vld [vmem:[%s0 + $0x6a0] sm:$0xff]
    %v222 = vld [vmem:[%s0 + $0x6a8] sm:$0xff]
    %v223 = vld [vmem:[%s0 + $0x6b0] sm:$0xff]
    %v224 = vld [vmem:[%s0 + $0x6b8] sm:$0xff]
    %v225 = vld [vmem:[%s0 + $0x6c0] sm:$0xff]
    %v226 = vld [vmem:[%s0 + $0x6c8] sm:$0xff]
    %v227 = vld [vmem:[%s0 + $0x6d0] sm:$0xff]
    %v228 = vld [vmem:[%s0 + $0x6d8] sm:$0xff]
    %v229 = vld [vmem:[%s0 + $0x6e0] sm:$0xff]
    %v230 = vld [vmem:[%s0 + $0x6e8] sm:$0xff]
    %v231 = vld [vmem:[%s0 + $0x6f0] sm:$0xff]
    %v232 = vld [vmem:[%s0 + $0x6f8] sm:$0xff]
    %v233 = vld [vmem:[%s0 + $0x700] sm:$0xff]
    %v234 = vld [vmem:[%s0 + $0x708] sm:$0xff]
    %v235 = vld [vmem:[%s0 + $0x710] sm:$0xff]
    %v236 = vld [vmem:[%s0 + $0x718] sm:$0xff]
    %v237 = vld [vmem:[%s0 + $0x720] sm:$0xff]
    %v238 = vld [vmem:[%s0 + $0x728] sm:$0xff]
    %v239 = vld [vmem:[%s0 + $0x730] sm:$0xff]
    %v240 = vld [vmem:[%s0 + $0x738] sm:$0xff]
    %v241 = vld [vmem:[%s0 + $0x740] sm:$0xff]
    %v242 = vld [vmem:[%s0 + $0x748] sm:$0xff]
    %v243 = vld [vmem:[%s0 + $0x750] sm:$0xff]
    %v244 = vld [vmem:[%s0 + $0x758] sm:$0xff]
    %v245 = vld [vmem:[%s0 + $0x760] sm:$0xff]
    %v246 = vld [vmem:[%s0 + $0x768] sm:$0xff]
    %v247 = vld [vmem:[%s0 + $0x770] sm:$0xff]
    %v248 = vld [vmem:[%s0 + $0x778] sm:$0xff]
    %v249 = vld [vmem:[%s0 + $0x780] sm:$0xff]
    %v250 = vld [vmem:[%s0 + $0x788] sm:$0xff]
    %v251 = vld [vmem:[%s0 + $0x790] sm:$0xff]
    %v252 = vld [vmem:[%s0 + $0x798] sm:$0xff]
    %v253 = vld [vmem:[%s0 + $0x7a0] sm:$0xff]
    %v254 = vld [vmem:[%s0 + $0x7a8] sm:$0xff]
    %v255 = vld [vmem:[%s0 + $0x7b0] sm:$0xff]
    %v256 = vld [vmem:[%s0 + $0x7b8] sm:$0xff]
    %v257 = vld [vmem:[%s0 + $0x7c0] sm:$0xff]
    %v258 = vld [vmem:[%s0 + $0x7c8] sm:$0xff]
    %v259 = vld [vmem:[%s0 + $0x7d0] sm:$0xff]
    %v260 = vld [vmem:[%s0 + $0x7d8] sm:$0xff]
    %v261 = vld [vmem:[%s0 + $0x7e0] sm:$0xff]
    %v262 = vld [vmem:[%s0 + $0x7e8] sm:$0xff]
    %v263 = vld [vmem:[%s0 + $0x7f0] sm:$0xff]
    %v264 = vld [vmem:[%s0 + $0x7f8] sm:$0xff]
    %vm265 = vcmask 130048
    %v266 = vsel %vm265, %v9, 0.0
    %267 = vadd.xlane.f32.xlu0 %v266
    %v268 = vpop.xlane.xlu0 %267
    %v269 = vsel %vm265, %v10, 0.0
    %270 = vadd.xlane.f32.xlu0 %v269
    %v271 = vpop.xlane.xlu0 %270
    %v272 = vsel %vm265, %v11, 0.0
    %273 = vadd.xlane.f32.xlu0 %v272
    %v274 = vpop.xlane.xlu0 %273
    %v275 = vsel %vm265, %v12, 0.0
    %276 = vadd.xlane.f32.xlu0 %v275
    %v277 = vpop.xlane.xlu0 %276
    %v278 = vsel %vm265, %v13, 0.0
    %279 = vadd.xlane.f32.xlu0 %v278
    %v280 = vpop.xlane.xlu0 %279
    %v281 = vsel %vm265, %v14, 0.0
    %282 = vadd.xlane.f32.xlu0 %v281
    %v283 = vpop.xlane.xlu0 %282
    %v284 = vsel %vm265, %v15, 0.0
    %285 = vadd.xlane.f32.xlu0 %v284
    %v286 = vpop.xlane.xlu0 %285
    %v287 = vsel %vm265, %v16, 0.0
    %288 = vadd.xlane.f32.xlu0 %v287
    %v289 = vpop.xlane.xlu0 %288
    %v290 = vsel %vm265, %v17, 0.0
    %291 = vadd.xlane.f32.xlu0 %v290
    %v292 = vpop.xlane.xlu0 %291
    %v293 = vsel %vm265, %v18, 0.0
    %294 = vadd.xlane.f32.xlu0 %v293
    %v295 = vpop.xlane.xlu0 %294
    %v296 = vsel %vm265, %v19, 0.0
    %297 = vadd.xlane.f32.xlu0 %v296
    %v298 = vpop.xlane.xlu0 %297
    %v299 = vsel %vm265, %v20, 0.0
    %300 = vadd.xlane.f32.xlu0 %v299
    %v301 = vpop.xlane.xlu0 %300
    %v302 = vsel %vm265, %v21, 0.0
    %303 = vadd.xlane.f32.xlu0 %v302
    %v304 = vpop.xlane.xlu0 %303
    %v305 = vsel %vm265, %v22, 0.0
    %306 = vadd.xlane.f32.xlu0 %v305
    %v307 = vpop.xlane.xlu0 %306
    %v308 = vsel %vm265, %v23, 0.0
    %309 = vadd.xlane.f32.xlu0 %v308
    %v310 = vpop.xlane.xlu0 %309
    %v311 = vsel %vm265, %v24, 0.0
    %312 = vadd.xlane.f32.xlu0 %v311
    %v313 = vpop.xlane.xlu0 %312
    %v314 = vsel %vm265, %v25, 0.0
    %315 = vadd.xlane.f32.xlu0 %v314
    %v316 = vpop.xlane.xlu0 %315
    %v317 = vsel %vm265, %v26, 0.0
    %318 = vadd.xlane.f32.xlu0 %v317
    %v319 = vpop.xlane.xlu0 %318
    %v320 = vsel %vm265, %v27, 0.0
    %321 = vadd.xlane.f32.xlu0 %v320
    %v322 = vpop.xlane.xlu0 %321
    %v323 = vsel %vm265, %v28, 0.0
    %324 = vadd.xlane.f32.xlu0 %v323
    %v325 = vpop.xlane.xlu0 %324
    %v326 = vsel %vm265, %v29, 0.0
    %327 = vadd.xlane.f32.xlu0 %v326
    %v328 = vpop.xlane.xlu0 %327
    %v329 = vsel %vm265, %v30, 0.0
    %330 = vadd.xlane.f32.xlu0 %v329
    %v331 = vpop.xlane.xlu0 %330
    %v332 = vsel %vm265, %v31, 0.0
    %333 = vadd.xlane.f32.xlu0 %v332
    %v334 = vpop.xlane.xlu0 %333
    %v335 = vsel %vm265, %v32, 0.0
    %336 = vadd.xlane.f32.xlu0 %v335
    %v337 = vpop.xlane.xlu0 %336
    %v338 = vsel %vm265, %v33, 0.0
    %339 = vadd.xlane.f32.xlu0 %v338
    %v340 = vpop.xlane.xlu0 %339
    %v341 = vsel %vm265, %v34, 0.0
    %342 = vadd.xlane.f32.xlu0 %v341
    %v343 = vpop.xlane.xlu0 %342
    %v344 = vsel %vm265, %v35, 0.0
    %345 = vadd.xlane.f32.xlu0 %v344
    %v346 = vpop.xlane.xlu0 %345
    %v347 = vsel %vm265, %v36, 0.0
    %348 = vadd.xlane.f32.xlu0 %v347
    %v349 = vpop.xlane.xlu0 %348
    %v350 = vsel %vm265, %v37, 0.0
    %351 = vadd.xlane.f32.xlu0 %v350
    %v352 = vpop.xlane.xlu0 %351
    %v353 = vsel %vm265, %v38, 0.0
    %354 = vadd.xlane.f32.xlu0 %v353
    %v355 = vpop.xlane.xlu0 %354
    %v356 = vsel %vm265, %v39, 0.0
    %357 = vadd.xlane.f32.xlu0 %v356
    %v358 = vpop.xlane.xlu0 %357
    %v359 = vsel %vm265, %v40, 0.0
    %360 = vadd.xlane.f32.xlu0 %v359
    %v361 = vpop.xlane.xlu0 %360
    %v362 = vsel %vm265, %v41, 0.0
    %363 = vadd.xlane.f32.xlu0 %v362
    %v364 = vpop.xlane.xlu0 %363
    %v365 = vsel %vm265, %v42, 0.0
    %366 = vadd.xlane.f32.xlu0 %v365
    %v367 = vpop.xlane.xlu0 %366
    %v368 = vsel %vm265, %v43, 0.0
    %369 = vadd.xlane.f32.xlu0 %v368
    %v370 = vpop.xlane.xlu0 %369
    %v371 = vsel %vm265, %v44, 0.0
    %372 = vadd.xlane.f32.xlu0 %v371
    %v373 = vpop.xlane.xlu0 %372
    %v374 = vsel %vm265, %v45, 0.0
    %375 = vadd.xlane.f32.xlu0 %v374
    %v376 = vpop.xlane.xlu0 %375
    %v377 = vsel %vm265, %v46, 0.0
    %378 = vadd.xlane.f32.xlu0 %v377
    %v379 = vpop.xlane.xlu0 %378
    %v380 = vsel %vm265, %v47, 0.0
    %381 = vadd.xlane.f32.xlu0 %v380
    %v382 = vpop.xlane.xlu0 %381
    %v383 = vsel %vm265, %v48, 0.0
    %384 = vadd.xlane.f32.xlu0 %v383
    %v385 = vpop.xlane.xlu0 %384
    %v386 = vsel %vm265, %v49, 0.0
    %387 = vadd.xlane.f32.xlu0 %v386
    %v388 = vpop.xlane.xlu0 %387
    %v389 = vsel %vm265, %v50, 0.0
    %390 = vadd.xlane.f32.xlu0 %v389
    %v391 = vpop.xlane.xlu0 %390
    %v392 = vsel %vm265, %v51, 0.0
    %393 = vadd.xlane.f32.xlu0 %v392
    %v394 = vpop.xlane.xlu0 %393
    %v395 = vsel %vm265, %v52, 0.0
    %396 = vadd.xlane.f32.xlu0 %v395
    %v397 = vpop.xlane.xlu0 %396
    %v398 = vsel %vm265, %v53, 0.0
    %399 = vadd.xlane.f32.xlu0 %v398
    %v400 = vpop.xlane.xlu0 %399
    %v401 = vsel %vm265, %v54, 0.0
    %402 = vadd.xlane.f32.xlu0 %v401
    %v403 = vpop.xlane.xlu0 %402
    %v404 = vsel %vm265, %v55, 0.0
    %405 = vadd.xlane.f32.xlu0 %v404
    %v406 = vpop.xlane.xlu0 %405
    %v407 = vsel %vm265, %v56, 0.0
    %408 = vadd.xlane.f32.xlu0 %v407
    %v409 = vpop.xlane.xlu0 %408
    %v410 = vsel %vm265, %v57, 0.0
    %411 = vadd.xlane.f32.xlu0 %v410
    %v412 = vpop.xlane.xlu0 %411
    %v413 = vsel %vm265, %v58, 0.0
    %414 = vadd.xlane.f32.xlu0 %v413
    %v415 = vpop.xlane.xlu0 %414
    %v416 = vsel %vm265, %v59, 0.0
    %417 = vadd.xlane.f32.xlu0 %v416
    %v418 = vpop.xlane.xlu0 %417
    %v419 = vsel %vm265, %v60, 0.0
    %420 = vadd.xlane.f32.xlu0 %v419
    %v421 = vpop.xlane.xlu0 %420
    %v422 = vsel %vm265, %v61, 0.0
    %423 = vadd.xlane.f32.xlu0 %v422
    %v424 = vpop.xlane.xlu0 %423
    %v425 = vsel %vm265, %v62, 0.0
    %426 = vadd.xlane.f32.xlu0 %v425
    %v427 = vpop.xlane.xlu0 %426
    %v428 = vsel %vm265, %v63, 0.0
    %429 = vadd.xlane.f32.xlu0 %v428
    %v430 = vpop.xlane.xlu0 %429
    %v431 = vsel %vm265, %v64, 0.0
    %432 = vadd.xlane.f32.xlu0 %v431
    %v433 = vpop.xlane.xlu0 %432
    %v434 = vsel %vm265, %v65, 0.0
    %435 = vadd.xlane.f32.xlu0 %v434
    %v436 = vpop.xlane.xlu0 %435
    %v437 = vsel %vm265, %v66, 0.0
    %438 = vadd.xlane.f32.xlu0 %v437
    %v439 = vpop.xlane.xlu0 %438
    %v440 = vsel %vm265, %v67, 0.0
    %441 = vadd.xlane.f32.xlu0 %v440
    %v442 = vpop.xlane.xlu0 %441
    %v443 = vsel %vm265, %v68, 0.0
    %444 = vadd.xlane.f32.xlu0 %v443
    %v445 = vpop.xlane.xlu0 %444
    %v446 = vsel %vm265, %v69, 0.0
    %447 = vadd.xlane.f32.xlu0 %v446
    %v448 = vpop.xlane.xlu0 %447
    %v449 = vsel %vm265, %v70, 0.0
    %450 = vadd.xlane.f32.xlu0 %v449
    %v451 = vpop.xlane.xlu0 %450
    %v452 = vsel %vm265, %v71, 0.0
    %453 = vadd.xlane.f32.xlu0 %v452
    %v454 = vpop.xlane.xlu0 %453
    %v455 = vsel %vm265, %v72, 0.0
    %456 = vadd.xlane.f32.xlu0 %v455
    %v457 = vpop.xlane.xlu0 %456
    %v458 = vsel %vm265, %v73, 0.0
    %459 = vadd.xlane.f32.xlu0 %v458
    %v460 = vpop.xlane.xlu0 %459
    %v461 = vsel %vm265, %v74, 0.0
    %462 = vadd.xlane.f32.xlu0 %v461
    %v463 = vpop.xlane.xlu0 %462
    %v464 = vsel %vm265, %v75, 0.0
    %465 = vadd.xlane.f32.xlu0 %v464
    %v466 = vpop.xlane.xlu0 %465
    %v467 = vsel %vm265, %v76, 0.0
    %468 = vadd.xlane.f32.xlu0 %v467
    %v469 = vpop.xlane.xlu0 %468
    %v470 = vsel %vm265, %v77, 0.0
    %471 = vadd.xlane.f32.xlu0 %v470
    %v472 = vpop.xlane.xlu0 %471
    %v473 = vsel %vm265, %v78, 0.0
    %474 = vadd.xlane.f32.xlu0 %v473
    %v475 = vpop.xlane.xlu0 %474
    %v476 = vsel %vm265, %v79, 0.0
    %477 = vadd.xlane.f32.xlu0 %v476
    %v478 = vpop.xlane.xlu0 %477
    %v479 = vsel %vm265, %v80, 0.0
    %480 = vadd.xlane.f32.xlu0 %v479
    %v481 = vpop.xlane.xlu0 %480
    %v482 = vsel %vm265, %v81, 0.0
    %483 = vadd.xlane.f32.xlu0 %v482
    %v484 = vpop.xlane.xlu0 %483
    %v485 = vsel %vm265, %v82, 0.0
    %486 = vadd.xlane.f32.xlu0 %v485
    %v487 = vpop.xlane.xlu0 %486
    %v488 = vsel %vm265, %v83, 0.0
    %489 = vadd.xlane.f32.xlu0 %v488
    %v490 = vpop.xlane.xlu0 %489
    %v491 = vsel %vm265, %v84, 0.0
    %492 = vadd.xlane.f32.xlu0 %v491
    %v493 = vpop.xlane.xlu0 %492
    %v494 = vsel %vm265, %v85, 0.0
    %495 = vadd.xlane.f32.xlu0 %v494
    %v496 = vpop.xlane.xlu0 %495
    %v497 = vsel %vm265, %v86, 0.0
    %498 = vadd.xlane.f32.xlu0 %v497
    %v499 = vpop.xlane.xlu0 %498
    %v500 = vsel %vm265, %v87, 0.0
    %501 = vadd.xlane.f32.xlu0 %v500
    %v502 = vpop.xlane.xlu0 %501
    %v503 = vsel %vm265, %v88, 0.0
    %504 = vadd.xlane.f32.xlu0 %v503
    %v505 = vpop.xlane.xlu0 %504
    %v506 = vsel %vm265, %v89, 0.0
    %507 = vadd.xlane.f32.xlu0 %v506
    %v508 = vpop.xlane.xlu0 %507
    %v509 = vsel %vm265, %v90, 0.0
    %510 = vadd.xlane.f32.xlu0 %v509
    %v511 = vpop.xlane.xlu0 %510
    %v512 = vsel %vm265, %v91, 0.0
    %513 = vadd.xlane.f32.xlu0 %v512
    %v514 = vpop.xlane.xlu0 %513
    %v515 = vsel %vm265, %v92, 0.0
    %516 = vadd.xlane.f32.xlu0 %v515
    %v517 = vpop.xlane.xlu0 %516
    %v518 = vsel %vm265, %v93, 0.0
    %519 = vadd.xlane.f32.xlu0 %v518
    %v520 = vpop.xlane.xlu0 %519
    %v521 = vsel %vm265, %v94, 0.0
    %522 = vadd.xlane.f32.xlu0 %v521
    %v523 = vpop.xlane.xlu0 %522
    %v524 = vsel %vm265, %v95, 0.0
    %525 = vadd.xlane.f32.xlu0 %v524
    %v526 = vpop.xlane.xlu0 %525
    %v527 = vsel %vm265, %v96, 0.0
    %528 = vadd.xlane.f32.xlu0 %v527
    %v529 = vpop.xlane.xlu0 %528
    %v530 = vsel %vm265, %v97, 0.0
    %531 = vadd.xlane.f32.xlu0 %v530
    %v532 = vpop.xlane.xlu0 %531
    %v533 = vsel %vm265, %v98, 0.0
    %534 = vadd.xlane.f32.xlu0 %v533
    %v535 = vpop.xlane.xlu0 %534
    %v536 = vsel %vm265, %v99, 0.0
    %537 = vadd.xlane.f32.xlu0 %v536
    %v538 = vpop.xlane.xlu0 %537
    %v539 = vsel %vm265, %v100, 0.0
    %540 = vadd.xlane.f32.xlu0 %v539
    %v541 = vpop.xlane.xlu0 %540
    %v542 = vsel %vm265, %v101, 0.0
    %543 = vadd.xlane.f32.xlu0 %v542
    %v544 = vpop.xlane.xlu0 %543
    %v545 = vsel %vm265, %v102, 0.0
    %546 = vadd.xlane.f32.xlu0 %v545
    %v547 = vpop.xlane.xlu0 %546
    %v548 = vsel %vm265, %v103, 0.0
    %549 = vadd.xlane.f32.xlu0 %v548
    %v550 = vpop.xlane.xlu0 %549
    %v551 = vsel %vm265, %v104, 0.0
    %552 = vadd.xlane.f32.xlu0 %v551
    %v553 = vpop.xlane.xlu0 %552
    %v554 = vsel %vm265, %v105, 0.0
    %555 = vadd.xlane.f32.xlu0 %v554
    %v556 = vpop.xlane.xlu0 %555
    %v557 = vsel %vm265, %v106, 0.0
    %558 = vadd.xlane.f32.xlu0 %v557
    %v559 = vpop.xlane.xlu0 %558
    %v560 = vsel %vm265, %v107, 0.0
    %561 = vadd.xlane.f32.xlu0 %v560
    %v562 = vpop.xlane.xlu0 %561
    %v563 = vsel %vm265, %v108, 0.0
    %564 = vadd.xlane.f32.xlu0 %v563
    %v565 = vpop.xlane.xlu0 %564
    %v566 = vsel %vm265, %v109, 0.0
    %567 = vadd.xlane.f32.xlu0 %v566
    %v568 = vpop.xlane.xlu0 %567
    %v569 = vsel %vm265, %v110, 0.0
    %570 = vadd.xlane.f32.xlu0 %v569
    %v571 = vpop.xlane.xlu0 %570
    %v572 = vsel %vm265, %v111, 0.0
    %573 = vadd.xlane.f32.xlu0 %v572
    %v574 = vpop.xlane.xlu0 %573
    %v575 = vsel %vm265, %v112, 0.0
    %576 = vadd.xlane.f32.xlu0 %v575
    %v577 = vpop.xlane.xlu0 %576
    %v578 = vsel %vm265, %v113, 0.0
    %579 = vadd.xlane.f32.xlu0 %v578
    %v580 = vpop.xlane.xlu0 %579
    %v581 = vsel %vm265, %v114, 0.0
    %582 = vadd.xlane.f32.xlu0 %v581
    %v583 = vpop.xlane.xlu0 %582
    %v584 = vsel %vm265, %v115, 0.0
    %585 = vadd.xlane.f32.xlu0 %v584
    %v586 = vpop.xlane.xlu0 %585
    %v587 = vsel %vm265, %v116, 0.0
    %588 = vadd.xlane.f32.xlu0 %v587
    %v589 = vpop.xlane.xlu0 %588
    %v590 = vsel %vm265, %v117, 0.0
    %591 = vadd.xlane.f32.xlu0 %v590
    %v592 = vpop.xlane.xlu0 %591
    %v593 = vsel %vm265, %v118, 0.0
    %594 = vadd.xlane.f32.xlu0 %v593
    %v595 = vpop.xlane.xlu0 %594
    %v596 = vsel %vm265, %v119, 0.0
    %597 = vadd.xlane.f32.xlu0 %v596
    %v598 = vpop.xlane.xlu0 %597
    %v599 = vsel %vm265, %v120, 0.0
    %600 = vadd.xlane.f32.xlu0 %v599
    %v601 = vpop.xlane.xlu0 %600
    %v602 = vsel %vm265, %v121, 0.0
    %603 = vadd.xlane.f32.xlu0 %v602
    %v604 = vpop.xlane.xlu0 %603
    %v605 = vsel %vm265, %v122, 0.0
    %606 = vadd.xlane.f32.xlu0 %v605
    %v607 = vpop.xlane.xlu0 %606
    %v608 = vsel %vm265, %v123, 0.0
    %609 = vadd.xlane.f32.xlu0 %v608
    %v610 = vpop.xlane.xlu0 %609
    %v611 = vsel %vm265, %v124, 0.0
    %612 = vadd.xlane.f32.xlu0 %v611
    %v613 = vpop.xlane.xlu0 %612
    %v614 = vsel %vm265, %v125, 0.0
    %615 = vadd.xlane.f32.xlu0 %v614
    %v616 = vpop.xlane.xlu0 %615
    %v617 = vsel %vm265, %v126, 0.0
    %618 = vadd.xlane.f32.xlu0 %v617
    %v619 = vpop.xlane.xlu0 %618
    %v620 = vsel %vm265, %v127, 0.0
    %621 = vadd.xlane.f32.xlu0 %v620
    %v622 = vpop.xlane.xlu0 %621
    %v623 = vsel %vm265, %v128, 0.0
    %624 = vadd.xlane.f32.xlu0 %v623
    %v625 = vpop.xlane.xlu0 %624
    %v626 = vsel %vm265, %v129, 0.0
    %627 = vadd.xlane.f32.xlu0 %v626
    %v628 = vpop.xlane.xlu0 %627
    %v629 = vsel %vm265, %v130, 0.0
    %630 = vadd.xlane.f32.xlu0 %v629
    %v631 = vpop.xlane.xlu0 %630
    %v632 = vsel %vm265, %v131, 0.0
    %633 = vadd.xlane.f32.xlu0 %v632
    %v634 = vpop.xlane.xlu0 %633
    %v635 = vsel %vm265, %v132, 0.0
    %636 = vadd.xlane.f32.xlu0 %v635
    %v637 = vpop.xlane.xlu0 %636
    %v638 = vsel %vm265, %v133, 0.0
    %639 = vadd.xlane.f32.xlu0 %v638
    %v640 = vpop.xlane.xlu0 %639
    %v641 = vsel %vm265, %v134, 0.0
    %642 = vadd.xlane.f32.xlu0 %v641
    %v643 = vpop.xlane.xlu0 %642
    %v644 = vsel %vm265, %v135, 0.0
    %645 = vadd.xlane.f32.xlu0 %v644
    %v646 = vpop.xlane.xlu0 %645
    %v647 = vsel %vm265, %v136, 0.0
    %648 = vadd.xlane.f32.xlu0 %v647
    %v649 = vpop.xlane.xlu0 %648
    %v650 = vsel %vm265, %v137, 0.0
    %651 = vadd.xlane.f32.xlu0 %v650
    %v652 = vpop.xlane.xlu0 %651
    %v653 = vsel %vm265, %v138, 0.0
    %654 = vadd.xlane.f32.xlu0 %v653
    %v655 = vpop.xlane.xlu0 %654
    %v656 = vsel %vm265, %v139, 0.0
    %657 = vadd.xlane.f32.xlu0 %v656
    %v658 = vpop.xlane.xlu0 %657
    %v659 = vsel %vm265, %v140, 0.0
    %660 = vadd.xlane.f32.xlu0 %v659
    %v661 = vpop.xlane.xlu0 %660
    %v662 = vsel %vm265, %v141, 0.0
    %663 = vadd.xlane.f32.xlu0 %v662
    %v664 = vpop.xlane.xlu0 %663
    %v665 = vsel %vm265, %v142, 0.0
    %666 = vadd.xlane.f32.xlu0 %v665
    %v667 = vpop.xlane.xlu0 %666
    %v668 = vsel %vm265, %v143, 0.0
    %669 = vadd.xlane.f32.xlu0 %v668
    %v670 = vpop.xlane.xlu0 %669
    %v671 = vsel %vm265, %v144, 0.0
    %672 = vadd.xlane.f32.xlu0 %v671
    %v673 = vpop.xlane.xlu0 %672
    %v674 = vsel %vm265, %v145, 0.0
    %675 = vadd.xlane.f32.xlu0 %v674
    %v676 = vpop.xlane.xlu0 %675
    %v677 = vsel %vm265, %v146, 0.0
    %678 = vadd.xlane.f32.xlu0 %v677
    %v679 = vpop.xlane.xlu0 %678
    %v680 = vsel %vm265, %v147, 0.0
    %681 = vadd.xlane.f32.xlu0 %v680
    %v682 = vpop.xlane.xlu0 %681
    %v683 = vsel %vm265, %v148, 0.0
    %684 = vadd.xlane.f32.xlu0 %v683
    %v685 = vpop.xlane.xlu0 %684
    %v686 = vsel %vm265, %v149, 0.0
    %687 = vadd.xlane.f32.xlu0 %v686
    %v688 = vpop.xlane.xlu0 %687
    %v689 = vsel %vm265, %v150, 0.0
    %690 = vadd.xlane.f32.xlu0 %v689
    %v691 = vpop.xlane.xlu0 %690
    %v692 = vsel %vm265, %v151, 0.0
    %693 = vadd.xlane.f32.xlu0 %v692
    %v694 = vpop.xlane.xlu0 %693
    %v695 = vsel %vm265, %v152, 0.0
    %696 = vadd.xlane.f32.xlu0 %v695
    %v697 = vpop.xlane.xlu0 %696
    %v698 = vsel %vm265, %v153, 0.0
    %699 = vadd.xlane.f32.xlu0 %v698
    %v700 = vpop.xlane.xlu0 %699
    %v701 = vsel %vm265, %v154, 0.0
    %702 = vadd.xlane.f32.xlu0 %v701
    %v703 = vpop.xlane.xlu0 %702
    %v704 = vsel %vm265, %v155, 0.0
    %705 = vadd.xlane.f32.xlu0 %v704
    %v706 = vpop.xlane.xlu0 %705
    %v707 = vsel %vm265, %v156, 0.0
    %708 = vadd.xlane.f32.xlu0 %v707
    %v709 = vpop.xlane.xlu0 %708
    %v710 = vsel %vm265, %v157, 0.0
    %711 = vadd.xlane.f32.xlu0 %v710
    %v712 = vpop.xlane.xlu0 %711
    %v713 = vsel %vm265, %v158, 0.0
    %714 = vadd.xlane.f32.xlu0 %v713
    %v715 = vpop.xlane.xlu0 %714
    %v716 = vsel %vm265, %v159, 0.0
    %717 = vadd.xlane.f32.xlu0 %v716
    %v718 = vpop.xlane.xlu0 %717
    %v719 = vsel %vm265, %v160, 0.0
    %720 = vadd.xlane.f32.xlu0 %v719
    %v721 = vpop.xlane.xlu0 %720
    %v722 = vsel %vm265, %v161, 0.0
    %723 = vadd.xlane.f32.xlu0 %v722
    %v724 = vpop.xlane.xlu0 %723
    %v725 = vsel %vm265, %v162, 0.0
    %726 = vadd.xlane.f32.xlu0 %v725
    %v727 = vpop.xlane.xlu0 %726
    %v728 = vsel %vm265, %v163, 0.0
    %729 = vadd.xlane.f32.xlu0 %v728
    %v730 = vpop.xlane.xlu0 %729
    %v731 = vsel %vm265, %v164, 0.0
    %732 = vadd.xlane.f32.xlu0 %v731
    %v733 = vpop.xlane.xlu0 %732
    %v734 = vsel %vm265, %v165, 0.0
    %735 = vadd.xlane.f32.xlu0 %v734
    %v736 = vpop.xlane.xlu0 %735
    %v737 = vsel %vm265, %v166, 0.0
    %738 = vadd.xlane.f32.xlu0 %v737
    %v739 = vpop.xlane.xlu0 %738
    %v740 = vsel %vm265, %v167, 0.0
    %741 = vadd.xlane.f32.xlu0 %v740
    %v742 = vpop.xlane.xlu0 %741
    %v743 = vsel %vm265, %v168, 0.0
    %744 = vadd.xlane.f32.xlu0 %v743
    %v745 = vpop.xlane.xlu0 %744
    %v746 = vsel %vm265, %v169, 0.0
    %747 = vadd.xlane.f32.xlu0 %v746
    %v748 = vpop.xlane.xlu0 %747
    %v749 = vsel %vm265, %v170, 0.0
    %750 = vadd.xlane.f32.xlu0 %v749
    %v751 = vpop.xlane.xlu0 %750
    %v752 = vsel %vm265, %v171, 0.0
    %753 = vadd.xlane.f32.xlu0 %v752
    %v754 = vpop.xlane.xlu0 %753
    %v755 = vsel %vm265, %v172, 0.0
    %756 = vadd.xlane.f32.xlu0 %v755
    %v757 = vpop.xlane.xlu0 %756
    %v758 = vsel %vm265, %v173, 0.0
    %759 = vadd.xlane.f32.xlu0 %v758
    %v760 = vpop.xlane.xlu0 %759
    %v761 = vsel %vm265, %v174, 0.0
    %762 = vadd.xlane.f32.xlu0 %v761
    %v763 = vpop.xlane.xlu0 %762
    %v764 = vsel %vm265, %v175, 0.0
    %765 = vadd.xlane.f32.xlu0 %v764
    %v766 = vpop.xlane.xlu0 %765
    %v767 = vsel %vm265, %v176, 0.0
    %768 = vadd.xlane.f32.xlu0 %v767
    %v769 = vpop.xlane.xlu0 %768
    %v770 = vsel %vm265, %v177, 0.0
    %771 = vadd.xlane.f32.xlu0 %v770
    %v772 = vpop.xlane.xlu0 %771
    %v773 = vsel %vm265, %v178, 0.0
    %774 = vadd.xlane.f32.xlu0 %v773
    %v775 = vpop.xlane.xlu0 %774
    %v776 = vsel %vm265, %v179, 0.0
    %777 = vadd.xlane.f32.xlu0 %v776
    %v778 = vpop.xlane.xlu0 %777
    %v779 = vsel %vm265, %v180, 0.0
    %780 = vadd.xlane.f32.xlu0 %v779
    %v781 = vpop.xlane.xlu0 %780
    %v782 = vsel %vm265, %v181, 0.0
    %783 = vadd.xlane.f32.xlu0 %v782
    %v784 = vpop.xlane.xlu0 %783
    %v785 = vsel %vm265, %v182, 0.0
    %786 = vadd.xlane.f32.xlu0 %v785
    %v787 = vpop.xlane.xlu0 %786
    %v788 = vsel %vm265, %v183, 0.0
    %789 = vadd.xlane.f32.xlu0 %v788
    %v790 = vpop.xlane.xlu0 %789
    %v791 = vsel %vm265, %v184, 0.0
    %792 = vadd.xlane.f32.xlu0 %v791
    %v793 = vpop.xlane.xlu0 %792
    %v794 = vsel %vm265, %v185, 0.0
    %795 = vadd.xlane.f32.xlu0 %v794
    %v796 = vpop.xlane.xlu0 %795
    %v797 = vsel %vm265, %v186, 0.0
    %798 = vadd.xlane.f32.xlu0 %v797
    %v799 = vpop.xlane.xlu0 %798
    %v800 = vsel %vm265, %v187, 0.0
    %801 = vadd.xlane.f32.xlu0 %v800
    %v802 = vpop.xlane.xlu0 %801
    %v803 = vsel %vm265, %v188, 0.0
    %804 = vadd.xlane.f32.xlu0 %v803
    %v805 = vpop.xlane.xlu0 %804
    %v806 = vsel %vm265, %v189, 0.0
    %807 = vadd.xlane.f32.xlu0 %v806
    %v808 = vpop.xlane.xlu0 %807
    %v809 = vsel %vm265, %v190, 0.0
    %810 = vadd.xlane.f32.xlu0 %v809
    %v811 = vpop.xlane.xlu0 %810
    %v812 = vsel %vm265, %v191, 0.0
    %813 = vadd.xlane.f32.xlu0 %v812
    %v814 = vpop.xlane.xlu0 %813
    %v815 = vsel %vm265, %v192, 0.0
    %816 = vadd.xlane.f32.xlu0 %v815
    %v817 = vpop.xlane.xlu0 %816
    %v818 = vsel %vm265, %v193, 0.0
    %819 = vadd.xlane.f32.xlu0 %v818
    %v820 = vpop.xlane.xlu0 %819
    %v821 = vsel %vm265, %v194, 0.0
    %822 = vadd.xlane.f32.xlu0 %v821
    %v823 = vpop.xlane.xlu0 %822
    %v824 = vsel %vm265, %v195, 0.0
    %825 = vadd.xlane.f32.xlu0 %v824
    %v826 = vpop.xlane.xlu0 %825
    %v827 = vsel %vm265, %v196, 0.0
    %828 = vadd.xlane.f32.xlu0 %v827
    %v829 = vpop.xlane.xlu0 %828
    %v830 = vsel %vm265, %v197, 0.0
    %831 = vadd.xlane.f32.xlu0 %v830
    %v832 = vpop.xlane.xlu0 %831
    %v833 = vsel %vm265, %v198, 0.0
    %834 = vadd.xlane.f32.xlu0 %v833
    %v835 = vpop.xlane.xlu0 %834
    %v836 = vsel %vm265, %v199, 0.0
    %837 = vadd.xlane.f32.xlu0 %v836
    %v838 = vpop.xlane.xlu0 %837
    %v839 = vsel %vm265, %v200, 0.0
    %840 = vadd.xlane.f32.xlu0 %v839
    %v841 = vpop.xlane.xlu0 %840
    %v842 = vsel %vm265, %v201, 0.0
    %843 = vadd.xlane.f32.xlu0 %v842
    %v844 = vpop.xlane.xlu0 %843
    %v845 = vsel %vm265, %v202, 0.0
    %846 = vadd.xlane.f32.xlu0 %v845
    %v847 = vpop.xlane.xlu0 %846
    %v848 = vsel %vm265, %v203, 0.0
    %849 = vadd.xlane.f32.xlu0 %v848
    %v850 = vpop.xlane.xlu0 %849
    %v851 = vsel %vm265, %v204, 0.0
    %852 = vadd.xlane.f32.xlu0 %v851
    %v853 = vpop.xlane.xlu0 %852
    %v854 = vsel %vm265, %v205, 0.0
    %855 = vadd.xlane.f32.xlu0 %v854
    %v856 = vpop.xlane.xlu0 %855
    %v857 = vsel %vm265, %v206, 0.0
    %858 = vadd.xlane.f32.xlu0 %v857
    %v859 = vpop.xlane.xlu0 %858
    %v860 = vsel %vm265, %v207, 0.0
    %861 = vadd.xlane.f32.xlu0 %v860
    %v862 = vpop.xlane.xlu0 %861
    %v863 = vsel %vm265, %v208, 0.0
    %864 = vadd.xlane.f32.xlu0 %v863
    %v865 = vpop.xlane.xlu0 %864
    %v866 = vsel %vm265, %v209, 0.0
    %867 = vadd.xlane.f32.xlu0 %v866
    %v868 = vpop.xlane.xlu0 %867
    %v869 = vsel %vm265, %v210, 0.0
    %870 = vadd.xlane.f32.xlu0 %v869
    %v871 = vpop.xlane.xlu0 %870
    %v872 = vsel %vm265, %v211, 0.0
    %873 = vadd.xlane.f32.xlu0 %v872
    %v874 = vpop.xlane.xlu0 %873
    %v875 = vsel %vm265, %v212, 0.0
    %876 = vadd.xlane.f32.xlu0 %v875
    %v877 = vpop.xlane.xlu0 %876
    %v878 = vsel %vm265, %v213, 0.0
    %879 = vadd.xlane.f32.xlu0 %v878
    %v880 = vpop.xlane.xlu0 %879
    %v881 = vsel %vm265, %v214, 0.0
    %882 = vadd.xlane.f32.xlu0 %v881
    %v883 = vpop.xlane.xlu0 %882
    %v884 = vsel %vm265, %v215, 0.0
    %885 = vadd.xlane.f32.xlu0 %v884
    %v886 = vpop.xlane.xlu0 %885
    %v887 = vsel %vm265, %v216, 0.0
    %888 = vadd.xlane.f32.xlu0 %v887
    %v889 = vpop.xlane.xlu0 %888
    %v890 = vsel %vm265, %v217, 0.0
    %891 = vadd.xlane.f32.xlu0 %v890
    %v892 = vpop.xlane.xlu0 %891
    %v893 = vsel %vm265, %v218, 0.0
    %894 = vadd.xlane.f32.xlu0 %v893
    %v895 = vpop.xlane.xlu0 %894
    %v896 = vsel %vm265, %v219, 0.0
    %897 = vadd.xlane.f32.xlu0 %v896
    %v898 = vpop.xlane.xlu0 %897
    %v899 = vsel %vm265, %v220, 0.0
    %900 = vadd.xlane.f32.xlu0 %v899
    %v901 = vpop.xlane.xlu0 %900
    %v902 = vsel %vm265, %v221, 0.0
    %903 = vadd.xlane.f32.xlu0 %v902
    %v904 = vpop.xlane.xlu0 %903
    %v905 = vsel %vm265, %v222, 0.0
    %906 = vadd.xlane.f32.xlu0 %v905
    %v907 = vpop.xlane.xlu0 %906
    %v908 = vsel %vm265, %v223, 0.0
    %909 = vadd.xlane.f32.xlu0 %v908
    %v910 = vpop.xlane.xlu0 %909
    %v911 = vsel %vm265, %v224, 0.0
    %912 = vadd.xlane.f32.xlu0 %v911
    %v913 = vpop.xlane.xlu0 %912
    %v914 = vsel %vm265, %v225, 0.0
    %915 = vadd.xlane.f32.xlu0 %v914
    %v916 = vpop.xlane.xlu0 %915
    %v917 = vsel %vm265, %v226, 0.0
    %918 = vadd.xlane.f32.xlu0 %v917
    %v919 = vpop.xlane.xlu0 %918
    %v920 = vsel %vm265, %v227, 0.0
    %921 = vadd.xlane.f32.xlu0 %v920
    %v922 = vpop.xlane.xlu0 %921
    %v923 = vsel %vm265, %v228, 0.0
    %924 = vadd.xlane.f32.xlu0 %v923
    %v925 = vpop.xlane.xlu0 %924
    %v926 = vsel %vm265, %v229, 0.0
    %927 = vadd.xlane.f32.xlu0 %v926
    %v928 = vpop.xlane.xlu0 %927
    %v929 = vsel %vm265, %v230, 0.0
    %930 = vadd.xlane.f32.xlu0 %v929
    %v931 = vpop.xlane.xlu0 %930
    %v932 = vsel %vm265, %v231, 0.0
    %933 = vadd.xlane.f32.xlu0 %v932
    %v934 = vpop.xlane.xlu0 %933
    %v935 = vsel %vm265, %v232, 0.0
    %936 = vadd.xlane.f32.xlu0 %v935
    %v937 = vpop.xlane.xlu0 %936
    %v938 = vsel %vm265, %v233, 0.0
    %939 = vadd.xlane.f32.xlu0 %v938
    %v940 = vpop.xlane.xlu0 %939
    %v941 = vsel %vm265, %v234, 0.0
    %942 = vadd.xlane.f32.xlu0 %v941
    %v943 = vpop.xlane.xlu0 %942
    %v944 = vsel %vm265, %v235, 0.0
    %945 = vadd.xlane.f32.xlu0 %v944
    %v946 = vpop.xlane.xlu0 %945
    %v947 = vsel %vm265, %v236, 0.0
    %948 = vadd.xlane.f32.xlu0 %v947
    %v949 = vpop.xlane.xlu0 %948
    %v950 = vsel %vm265, %v237, 0.0
    %951 = vadd.xlane.f32.xlu0 %v950
    %v952 = vpop.xlane.xlu0 %951
    %v953 = vsel %vm265, %v238, 0.0
    %954 = vadd.xlane.f32.xlu0 %v953
    %v955 = vpop.xlane.xlu0 %954
    %v956 = vsel %vm265, %v239, 0.0
    %957 = vadd.xlane.f32.xlu0 %v956
    %v958 = vpop.xlane.xlu0 %957
    %v959 = vsel %vm265, %v240, 0.0
    %960 = vadd.xlane.f32.xlu0 %v959
    %v961 = vpop.xlane.xlu0 %960
    %v962 = vsel %vm265, %v241, 0.0
    %963 = vadd.xlane.f32.xlu0 %v962
    %v964 = vpop.xlane.xlu0 %963
    %v965 = vsel %vm265, %v242, 0.0
    %966 = vadd.xlane.f32.xlu0 %v965
    %v967 = vpop.xlane.xlu0 %966
    %v968 = vsel %vm265, %v243, 0.0
    %969 = vadd.xlane.f32.xlu0 %v968
    %v970 = vpop.xlane.xlu0 %969
    %v971 = vsel %vm265, %v244, 0.0
    %972 = vadd.xlane.f32.xlu0 %v971
    %v973 = vpop.xlane.xlu0 %972
    %v974 = vsel %vm265, %v245, 0.0
    %975 = vadd.xlane.f32.xlu0 %v974
    %v976 = vpop.xlane.xlu0 %975
    %v977 = vsel %vm265, %v246, 0.0
    %978 = vadd.xlane.f32.xlu0 %v977
    %v979 = vpop.xlane.xlu0 %978
    %v980 = vsel %vm265, %v247, 0.0
    %981 = vadd.xlane.f32.xlu0 %v980
    %v982 = vpop.xlane.xlu0 %981
    %v983 = vsel %vm265, %v248, 0.0
    %984 = vadd.xlane.f32.xlu0 %v983
    %v985 = vpop.xlane.xlu0 %984
    %v986 = vsel %vm265, %v249, 0.0
    %987 = vadd.xlane.f32.xlu0 %v986
    %v988 = vpop.xlane.xlu0 %987
    %v989 = vsel %vm265, %v250, 0.0
    %990 = vadd.xlane.f32.xlu0 %v989
    %v991 = vpop.xlane.xlu0 %990
    %v992 = vsel %vm265, %v251, 0.0
    %993 = vadd.xlane.f32.xlu0 %v992
    %v994 = vpop.xlane.xlu0 %993
    %v995 = vsel %vm265, %v252, 0.0
    %996 = vadd.xlane.f32.xlu0 %v995
    %v997 = vpop.xlane.xlu0 %996
    %v998 = vsel %vm265, %v253, 0.0
    %999 = vadd.xlane.f32.xlu0 %v998
    %v1000 = vpop.xlane.xlu0 %999
    %v1001 = vsel %vm265, %v254, 0.0
    %1002 = vadd.xlane.f32.xlu0 %v1001
    %v1003 = vpop.xlane.xlu0 %1002
    %v1004 = vsel %vm265, %v255, 0.0
    %1005 = vadd.xlane.f32.xlu0 %v1004
    %v1006 = vpop.xlane.xlu0 %1005
    %v1007 = vsel %vm265, %v256, 0.0
    %1008 = vadd.xlane.f32.xlu0 %v1007
    %v1009 = vpop.xlane.xlu0 %1008
    %v1010 = vsel %vm265, %v257, 0.0
    %1011 = vadd.xlane.f32.xlu0 %v1010
    %v1012 = vpop.xlane.xlu0 %1011
    %v1013 = vsel %vm265, %v258, 0.0
    %1014 = vadd.xlane.f32.xlu0 %v1013
    %v1015 = vpop.xlane.xlu0 %1014
    %v1016 = vsel %vm265, %v259, 0.0
    %1017 = vadd.xlane.f32.xlu0 %v1016
    %v1018 = vpop.xlane.xlu0 %1017
    %v1019 = vsel %vm265, %v260, 0.0
    %1020 = vadd.xlane.f32.xlu0 %v1019
    %v1021 = vpop.xlane.xlu0 %1020
    %v1022 = vsel %vm265, %v261, 0.0
    %1023 = vadd.xlane.f32.xlu0 %v1022
    %v1024 = vpop.xlane.xlu0 %1023
    %v1025 = vsel %vm265, %v262, 0.0
    %1026 = vadd.xlane.f32.xlu0 %v1025
    %v1027 = vpop.xlane.xlu0 %1026
    %v1028 = vsel %vm265, %v263, 0.0
    %1029 = vadd.xlane.f32.xlu0 %v1028
    %v1030 = vpop.xlane.xlu0 %1029
    %v1031 = vsel %vm265, %v264, 0.0
    %1032 = vadd.xlane.f32.xlu0 %v1031
    %v1033 = vpop.xlane.xlu0 %1032
    %v1034 = vmul.f32 %v268, 0.0625
    %v1035 = vmul.f32 %v271, 0.0625
    %v1036 = vmul.f32 %v274, 0.0625
    %v1037 = vmul.f32 %v277, 0.0625
    %v1038 = vmul.f32 %v280, 0.0625
    %v1039 = vmul.f32 %v283, 0.0625
    %v1040 = vmul.f32 %v286, 0.0625
    %v1041 = vmul.f32 %v289, 0.0625
    %v1042 = vmul.f32 %v292, 0.0625
    %v1043 = vmul.f32 %v295, 0.0625
    %v1044 = vmul.f32 %v298, 0.0625
    %v1045 = vmul.f32 %v301, 0.0625
    %v1046 = vmul.f32 %v304, 0.0625
    %v1047 = vmul.f32 %v307, 0.0625
    %v1048 = vmul.f32 %v310, 0.0625
    %v1049 = vmul.f32 %v313, 0.0625
    %v1050 = vmul.f32 %v316, 0.0625
    %v1051 = vmul.f32 %v319, 0.0625
    %v1052 = vmul.f32 %v322, 0.0625
    %v1053 = vmul.f32 %v325, 0.0625
    %v1054 = vmul.f32 %v328, 0.0625
    %v1055 = vmul.f32 %v331, 0.0625
    %v1056 = vmul.f32 %v334, 0.0625
    %v1057 = vmul.f32 %v337, 0.0625
    %v1058 = vmul.f32 %v340, 0.0625
    %v1059 = vmul.f32 %v343, 0.0625
    %v1060 = vmul.f32 %v346, 0.0625
    %v1061 = vmul.f32 %v349, 0.0625
    %v1062 = vmul.f32 %v352, 0.0625
    %v1063 = vmul.f32 %v355, 0.0625
    %v1064 = vmul.f32 %v358, 0.0625
    %v1065 = vmul.f32 %v361, 0.0625
    %v1066 = vmul.f32 %v364, 0.0625
    %v1067 = vmul.f32 %v367, 0.0625
    %v1068 = vmul.f32 %v370, 0.0625
    %v1069 = vmul.f32 %v373, 0.0625
    %v1070 = vmul.f32 %v376, 0.0625
    %v1071 = vmul.f32 %v379, 0.0625
    %v1072 = vmul.f32 %v382, 0.0625
    %v1073 = vmul.f32 %v385, 0.0625
    %v1074 = vmul.f32 %v388, 0.0625
    %v1075 = vmul.f32 %v391, 0.0625
    %v1076 = vmul.f32 %v394, 0.0625
    %v1077 = vmul.f32 %v397, 0.0625
    %v1078 = vmul.f32 %v400, 0.0625
    %v1079 = vmul.f32 %v403, 0.0625
    %v1080 = vmul.f32 %v406, 0.0625
    %v1081 = vmul.f32 %v409, 0.0625
    %v1082 = vmul.f32 %v412, 0.0625
    %v1083 = vmul.f32 %v415, 0.0625
    %v1084 = vmul.f32 %v418, 0.0625
    %v1085 = vmul.f32 %v421, 0.0625
    %v1086 = vmul.f32 %v424, 0.0625
    %v1087 = vmul.f32 %v427, 0.0625
    %v1088 = vmul.f32 %v430, 0.0625
    %v1089 = vmul.f32 %v433, 0.0625
    %v1090 = vmul.f32 %v436, 0.0625
    %v1091 = vmul.f32 %v439, 0.0625
    %v1092 = vmul.f32 %v442, 0.0625
    %v1093 = vmul.f32 %v445, 0.0625
    %v1094 = vmul.f32 %v448, 0.0625
    %v1095 = vmul.f32 %v451, 0.0625
    %v1096 = vmul.f32 %v454, 0.0625
    %v1097 = vmul.f32 %v457, 0.0625
    %v1098 = vmul.f32 %v460, 0.0625
    %v1099 = vmul.f32 %v463, 0.0625
    %v1100 = vmul.f32 %v466, 0.0625
    %v1101 = vmul.f32 %v469, 0.0625
    %v1102 = vmul.f32 %v472, 0.0625
    %v1103 = vmul.f32 %v475, 0.0625
    %v1104 = vmul.f32 %v478, 0.0625
    %v1105 = vmul.f32 %v481, 0.0625
    %v1106 = vmul.f32 %v484, 0.0625
    %v1107 = vmul.f32 %v487, 0.0625
    %v1108 = vmul.f32 %v490, 0.0625
    %v1109 = vmul.f32 %v493, 0.0625
    %v1110 = vmul.f32 %v496, 0.0625
    %v1111 = vmul.f32 %v499, 0.0625
    %v1112 = vmul.f32 %v502, 0.0625
    %v1113 = vmul.f32 %v505, 0.0625
    %v1114 = vmul.f32 %v508, 0.0625
    %v1115 = vmul.f32 %v511, 0.0625
    %v1116 = vmul.f32 %v514, 0.0625
    %v1117 = vmul.f32 %v517, 0.0625
    %v1118 = vmul.f32 %v520, 0.0625
    %v1119 = vmul.f32 %v523, 0.0625
    %v1120 = vmul.f32 %v526, 0.0625
    %v1121 = vmul.f32 %v529, 0.0625
    %v1122 = vmul.f32 %v532, 0.0625
    %v1123 = vmul.f32 %v535, 0.0625
    %v1124 = vmul.f32 %v538, 0.0625
    %v1125 = vmul.f32 %v541, 0.0625
    %v1126 = vmul.f32 %v544, 0.0625
    %v1127 = vmul.f32 %v547, 0.0625
    %v1128 = vmul.f32 %v550, 0.0625
    %v1129 = vmul.f32 %v553, 0.0625
    %v1130 = vmul.f32 %v556, 0.0625
    %v1131 = vmul.f32 %v559, 0.0625
    %v1132 = vmul.f32 %v562, 0.0625
    %v1133 = vmul.f32 %v565, 0.0625
    %v1134 = vmul.f32 %v568, 0.0625
    %v1135 = vmul.f32 %v571, 0.0625
    %v1136 = vmul.f32 %v574, 0.0625
    %v1137 = vmul.f32 %v577, 0.0625
    %v1138 = vmul.f32 %v580, 0.0625
    %v1139 = vmul.f32 %v583, 0.0625
    %v1140 = vmul.f32 %v586, 0.0625
    %v1141 = vmul.f32 %v589, 0.0625
    %v1142 = vmul.f32 %v592, 0.0625
    %v1143 = vmul.f32 %v595, 0.0625
    %v1144 = vmul.f32 %v598, 0.0625
    %v1145 = vmul.f32 %v601, 0.0625
    %v1146 = vmul.f32 %v604, 0.0625
    %v1147 = vmul.f32 %v607, 0.0625
    %v1148 = vmul.f32 %v610, 0.0625
    %v1149 = vmul.f32 %v613, 0.0625
    %v1150 = vmul.f32 %v616, 0.0625
    %v1151 = vmul.f32 %v619, 0.0625
    %v1152 = vmul.f32 %v622, 0.0625
    %v1153 = vmul.f32 %v625, 0.0625
    %v1154 = vmul.f32 %v628, 0.0625
    %v1155 = vmul.f32 %v631, 0.0625
    %v1156 = vmul.f32 %v634, 0.0625
    %v1157 = vmul.f32 %v637, 0.0625
    %v1158 = vmul.f32 %v640, 0.0625
    %v1159 = vmul.f32 %v643, 0.0625
    %v1160 = vmul.f32 %v646, 0.0625
    %v1161 = vmul.f32 %v649, 0.0625
    %v1162 = vmul.f32 %v652, 0.0625
    %v1163 = vmul.f32 %v655, 0.0625
    %v1164 = vmul.f32 %v658, 0.0625
    %v1165 = vmul.f32 %v661, 0.0625
    %v1166 = vmul.f32 %v664, 0.0625
    %v1167 = vmul.f32 %v667, 0.0625
    %v1168 = vmul.f32 %v670, 0.0625
    %v1169 = vmul.f32 %v673, 0.0625
    %v1170 = vmul.f32 %v676, 0.0625
    %v1171 = vmul.f32 %v679, 0.0625
    %v1172 = vmul.f32 %v682, 0.0625
    %v1173 = vmul.f32 %v685, 0.0625
    %v1174 = vmul.f32 %v688, 0.0625
    %v1175 = vmul.f32 %v691, 0.0625
    %v1176 = vmul.f32 %v694, 0.0625
    %v1177 = vmul.f32 %v697, 0.0625
    %v1178 = vmul.f32 %v700, 0.0625
    %v1179 = vmul.f32 %v703, 0.0625
    %v1180 = vmul.f32 %v706, 0.0625
    %v1181 = vmul.f32 %v709, 0.0625
    %v1182 = vmul.f32 %v712, 0.0625
    %v1183 = vmul.f32 %v715, 0.0625
    %v1184 = vmul.f32 %v718, 0.0625
    %v1185 = vmul.f32 %v721, 0.0625
    %v1186 = vmul.f32 %v724, 0.0625
    %v1187 = vmul.f32 %v727, 0.0625
    %v1188 = vmul.f32 %v730, 0.0625
    %v1189 = vmul.f32 %v733, 0.0625
    %v1190 = vmul.f32 %v736, 0.0625
    %v1191 = vmul.f32 %v739, 0.0625
    %v1192 = vmul.f32 %v742, 0.0625
    %v1193 = vmul.f32 %v745, 0.0625
    %v1194 = vmul.f32 %v748, 0.0625
    %v1195 = vmul.f32 %v751, 0.0625
    %v1196 = vmul.f32 %v754, 0.0625
    %v1197 = vmul.f32 %v757, 0.0625
    %v1198 = vmul.f32 %v760, 0.0625
    %v1199 = vmul.f32 %v763, 0.0625
    %v1200 = vmul.f32 %v766, 0.0625
    %v1201 = vmul.f32 %v769, 0.0625
    %v1202 = vmul.f32 %v772, 0.0625
    %v1203 = vmul.f32 %v775, 0.0625
    %v1204 = vmul.f32 %v778, 0.0625
    %v1205 = vmul.f32 %v781, 0.0625
    %v1206 = vmul.f32 %v784, 0.0625
    %v1207 = vmul.f32 %v787, 0.0625
    %v1208 = vmul.f32 %v790, 0.0625
    %v1209 = vmul.f32 %v793, 0.0625
    %v1210 = vmul.f32 %v796, 0.0625
    %v1211 = vmul.f32 %v799, 0.0625
    %v1212 = vmul.f32 %v802, 0.0625
    %v1213 = vmul.f32 %v805, 0.0625
    %v1214 = vmul.f32 %v808, 0.0625
    %v1215 = vmul.f32 %v811, 0.0625
    %v1216 = vmul.f32 %v814, 0.0625
    %v1217 = vmul.f32 %v817, 0.0625
    %v1218 = vmul.f32 %v820, 0.0625
    %v1219 = vmul.f32 %v823, 0.0625
    %v1220 = vmul.f32 %v826, 0.0625
    %v1221 = vmul.f32 %v829, 0.0625
    %v1222 = vmul.f32 %v832, 0.0625
    %v1223 = vmul.f32 %v835, 0.0625
    %v1224 = vmul.f32 %v838, 0.0625
    %v1225 = vmul.f32 %v841, 0.0625
    %v1226 = vmul.f32 %v844, 0.0625
    %v1227 = vmul.f32 %v847, 0.0625
    %v1228 = vmul.f32 %v850, 0.0625
    %v1229 = vmul.f32 %v853, 0.0625
    %v1230 = vmul.f32 %v856, 0.0625
    %v1231 = vmul.f32 %v859, 0.0625
    %v1232 = vmul.f32 %v862, 0.0625
    %v1233 = vmul.f32 %v865, 0.0625
    %v1234 = vmul.f32 %v868, 0.0625
    %v1235 = vmul.f32 %v871, 0.0625
    %v1236 = vmul.f32 %v874, 0.0625
    %v1237 = vmul.f32 %v877, 0.0625
    %v1238 = vmul.f32 %v880, 0.0625
    %v1239 = vmul.f32 %v883, 0.0625
    %v1240 = vmul.f32 %v886, 0.0625
    %v1241 = vmul.f32 %v889, 0.0625
    %v1242 = vmul.f32 %v892, 0.0625
    %v1243 = vmul.f32 %v895, 0.0625
    %v1244 = vmul.f32 %v898, 0.0625
    %v1245 = vmul.f32 %v901, 0.0625
    %v1246 = vmul.f32 %v904, 0.0625
    %v1247 = vmul.f32 %v907, 0.0625
    %v1248 = vmul.f32 %v910, 0.0625
    %v1249 = vmul.f32 %v913, 0.0625
    %v1250 = vmul.f32 %v916, 0.0625
    %v1251 = vmul.f32 %v919, 0.0625
    %v1252 = vmul.f32 %v922, 0.0625
    %v1253 = vmul.f32 %v925, 0.0625
    %v1254 = vmul.f32 %v928, 0.0625
    %v1255 = vmul.f32 %v931, 0.0625
    %v1256 = vmul.f32 %v934, 0.0625
    %v1257 = vmul.f32 %v937, 0.0625
    %v1258 = vmul.f32 %v940, 0.0625
    %v1259 = vmul.f32 %v943, 0.0625
    %v1260 = vmul.f32 %v946, 0.0625
    %v1261 = vmul.f32 %v949, 0.0625
    %v1262 = vmul.f32 %v952, 0.0625
    %v1263 = vmul.f32 %v955, 0.0625
    %v1264 = vmul.f32 %v958, 0.0625
    %v1265 = vmul.f32 %v961, 0.0625
    %v1266 = vmul.f32 %v964, 0.0625
    %v1267 = vmul.f32 %v967, 0.0625
    %v1268 = vmul.f32 %v970, 0.0625
    %v1269 = vmul.f32 %v973, 0.0625
    %v1270 = vmul.f32 %v976, 0.0625
    %v1271 = vmul.f32 %v979, 0.0625
    %v1272 = vmul.f32 %v982, 0.0625
    %v1273 = vmul.f32 %v985, 0.0625
    %v1274 = vmul.f32 %v988, 0.0625
    %v1275 = vmul.f32 %v991, 0.0625
    %v1276 = vmul.f32 %v994, 0.0625
    %v1277 = vmul.f32 %v997, 0.0625
    %v1278 = vmul.f32 %v1000, 0.0625
    %v1279 = vmul.f32 %v1003, 0.0625
    %v1280 = vmul.f32 %v1006, 0.0625
    %v1281 = vmul.f32 %v1009, 0.0625
    %v1282 = vmul.f32 %v1012, 0.0625
    %v1283 = vmul.f32 %v1015, 0.0625
    %v1284 = vmul.f32 %v1018, 0.0625
    %v1285 = vmul.f32 %v1021, 0.0625
    %v1286 = vmul.f32 %v1024, 0.0625
    %v1287 = vmul.f32 %v1027, 0.0625
    %v1288 = vmul.f32 %v1030, 0.0625
    %v1289 = vmul.f32 %v1033, 0.0625
    %v1546 = vlaneseq
    %v1547 = vand.u32 %v1546, 127
    %v1548 = vlaneseq
    %v1549 = vshrl.u32 %v1548, 7
    %v1550 = vsub.s32 %v1547, %v1549
    %v1551 = vrot.slane %v1034, %v1550
    %v1552 = vadd.s32 %v1547, 4294967288
    %v1553 = vlaneseq
    %v1554 = vshrl.u32 %v1553, 7
    %v1555 = vsub.s32 %v1552, %v1554
    %v1556 = vrot.slane %v1035, %v1555
    %vm1557 = vcmask 130112
    %v1558 = vsel %vm1557, %v1556, %v1551
    %v1559 = vadd.s32 %v1547, 4294967280
    %v1560 = vlaneseq
    %v1561 = vshrl.u32 %v1560, 7
    %v1562 = vsub.s32 %v1559, %v1561
    %v1563 = vrot.slane %v1036, %v1562
    %vm1564 = vcmask 195712
    %v1565 = vsel %vm1564, %v1563, %v1558
    %v1566 = vadd.s32 %v1547, 4294967272
    %v1567 = vlaneseq
    %v1568 = vshrl.u32 %v1567, 7
    %v1569 = vsub.s32 %v1566, %v1568
    %v1570 = vrot.slane %v1037, %v1569
    %vm1571 = vcmask 261312
    %v1572 = vsel %vm1571, %v1570, %v1565
    %v1573 = vadd.s32 %v1547, 4294967264
    %v1574 = vlaneseq
    %v1575 = vshrl.u32 %v1574, 7
    %v1576 = vsub.s32 %v1573, %v1575
    %v1577 = vrot.slane %v1038, %v1576
    %vm1578 = vcmask 326912
    %v1579 = vsel %vm1578, %v1577, %v1572
    %v1580 = vadd.s32 %v1547, 4294967256
    %v1581 = vlaneseq
    %v1582 = vshrl.u32 %v1581, 7
    %v1583 = vsub.s32 %v1580, %v1582
    %v1584 = vrot.slane %v1039, %v1583
    %vm1585 = vcmask 392512
    %v1586 = vsel %vm1585, %v1584, %v1579
    %v1587 = vadd.s32 %v1547, 4294967248
    %v1588 = vlaneseq
    %v1589 = vshrl.u32 %v1588, 7
    %v1590 = vsub.s32 %v1587, %v1589
    %v1591 = vrot.slane %v1040, %v1590
    %vm1592 = vcmask 458112
    %v1593 = vsel %vm1592, %v1591, %v1586
    %v1594 = vadd.s32 %v1547, 4294967240
    %v1595 = vlaneseq
    %v1596 = vshrl.u32 %v1595, 7
    %v1597 = vsub.s32 %v1594, %v1596
    %v1598 = vrot.slane %v1041, %v1597
    %vm1599 = vcmask 523712
    %v1600 = vsel %vm1599, %v1598, %v1593
    %v1601 = vadd.s32 %v1547, 4294967232
    %v1602 = vlaneseq
    %v1603 = vshrl.u32 %v1602, 7
    %v1604 = vsub.s32 %v1601, %v1603
    %v1605 = vrot.slane %v1042, %v1604
    %vm1606 = vcmask 589312
    %v1607 = vsel %vm1606, %v1605, %v1600
    %v1608 = vadd.s32 %v1547, 4294967224
    %v1609 = vlaneseq
    %v1610 = vshrl.u32 %v1609, 7
    %v1611 = vsub.s32 %v1608, %v1610
    %v1612 = vrot.slane %v1043, %v1611
    %vm1613 = vcmask 654912
    %v1614 = vsel %vm1613, %v1612, %v1607
    %v1615 = vadd.s32 %v1547, 4294967216
    %v1616 = vlaneseq
    %v1617 = vshrl.u32 %v1616, 7
    %v1618 = vsub.s32 %v1615, %v1617
    %v1619 = vrot.slane %v1044, %v1618
    %vm1620 = vcmask 720512
    %v1621 = vsel %vm1620, %v1619, %v1614
    %v1622 = vadd.s32 %v1547, 4294967208
    %v1623 = vlaneseq
    %v1624 = vshrl.u32 %v1623, 7
    %v1625 = vsub.s32 %v1622, %v1624
    %v1626 = vrot.slane %v1045, %v1625
    %vm1627 = vcmask 786112
    %v1628 = vsel %vm1627, %v1626, %v1621
    %v1629 = vadd.s32 %v1547, 4294967200
    %v1630 = vlaneseq
    %v1631 = vshrl.u32 %v1630, 7
    %v1632 = vsub.s32 %v1629, %v1631
    %v1633 = vrot.slane %v1046, %v1632
    %vm1634 = vcmask 851712
    %v1635 = vsel %vm1634, %v1633, %v1628
    %v1636 = vadd.s32 %v1547, 4294967192
    %v1637 = vlaneseq
    %v1638 = vshrl.u32 %v1637, 7
    %v1639 = vsub.s32 %v1636, %v1638
    %v1640 = vrot.slane %v1047, %v1639
    %vm1641 = vcmask 917312
    %v1642 = vsel %vm1641, %v1640, %v1635
    %v1643 = vadd.s32 %v1547, 4294967184
    %v1644 = vlaneseq
    %v1645 = vshrl.u32 %v1644, 7
    %v1646 = vsub.s32 %v1643, %v1645
    %v1647 = vrot.slane %v1048, %v1646
    %vm1648 = vcmask 982912
    %v1649 = vsel %vm1648, %v1647, %v1642
    %v1650 = vadd.s32 %v1547, 4294967176
    %v1651 = vlaneseq
    %v1652 = vshrl.u32 %v1651, 7
    %v1653 = vsub.s32 %v1650, %v1652
    %v1654 = vrot.slane %v1049, %v1653
    %vm1655 = vcmask 1048512
    %v1656 = vsel %vm1655, %v1654, %v1649
    %v1657 = vlaneseq
    %v1658 = vshrl.u32 %v1657, 7
    %v1659 = vsub.s32 %v1547, %v1658
    %v1660 = vrot.slane %v1050, %v1659
    %v1661 = vlaneseq
    %v1662 = vshrl.u32 %v1661, 7
    %v1663 = vsub.s32 %v1552, %v1662
    %v1664 = vrot.slane %v1051, %v1663
    %v1665 = vsel %vm1557, %v1664, %v1660
    %v1666 = vlaneseq
    %v1667 = vshrl.u32 %v1666, 7
    %v1668 = vsub.s32 %v1559, %v1667
    %v1669 = vrot.slane %v1052, %v1668
    %v1670 = vsel %vm1564, %v1669, %v1665
    %v1671 = vlaneseq
    %v1672 = vshrl.u32 %v1671, 7
    %v1673 = vsub.s32 %v1566, %v1672
    %v1674 = vrot.slane %v1053, %v1673
    %v1675 = vsel %vm1571, %v1674, %v1670
    %v1676 = vlaneseq
    %v1677 = vshrl.u32 %v1676, 7
    %v1678 = vsub.s32 %v1573, %v1677
    %v1679 = vrot.slane %v1054, %v1678
    %v1680 = vsel %vm1578, %v1679, %v1675
    %v1681 = vlaneseq
    %v1682 = vshrl.u32 %v1681, 7
    %v1683 = vsub.s32 %v1580, %v1682
    %v1684 = vrot.slane %v1055, %v1683
    %v1685 = vsel %vm1585, %v1684, %v1680
    %v1686 = vlaneseq
    %v1687 = vshrl.u32 %v1686, 7
    %v1688 = vsub.s32 %v1587, %v1687
    %v1689 = vrot.slane %v1056, %v1688
    %v1690 = vsel %vm1592, %v1689, %v1685
    %v1691 = vlaneseq
    %v1692 = vshrl.u32 %v1691, 7
    %v1693 = vsub.s32 %v1594, %v1692
    %v1694 = vrot.slane %v1057, %v1693
    %v1695 = vsel %vm1599, %v1694, %v1690
    %v1696 = vlaneseq
    %v1697 = vshrl.u32 %v1696, 7
    %v1698 = vsub.s32 %v1601, %v1697
    %v1699 = vrot.slane %v1058, %v1698
    %v1700 = vsel %vm1606, %v1699, %v1695
    %v1701 = vlaneseq
    %v1702 = vshrl.u32 %v1701, 7
    %v1703 = vsub.s32 %v1608, %v1702
    %v1704 = vrot.slane %v1059, %v1703
    %v1705 = vsel %vm1613, %v1704, %v1700
    %v1706 = vlaneseq
    %v1707 = vshrl.u32 %v1706, 7
    %v1708 = vsub.s32 %v1615, %v1707
    %v1709 = vrot.slane %v1060, %v1708
    %v1710 = vsel %vm1620, %v1709, %v1705
    %v1711 = vlaneseq
    %v1712 = vshrl.u32 %v1711, 7
    %v1713 = vsub.s32 %v1622, %v1712
    %v1714 = vrot.slane %v1061, %v1713
    %v1715 = vsel %vm1627, %v1714, %v1710
    %v1716 = vlaneseq
    %v1717 = vshrl.u32 %v1716, 7
    %v1718 = vsub.s32 %v1629, %v1717
    %v1719 = vrot.slane %v1062, %v1718
    %v1720 = vsel %vm1634, %v1719, %v1715
    %v1721 = vlaneseq
    %v1722 = vshrl.u32 %v1721, 7
    %v1723 = vsub.s32 %v1636, %v1722
    %v1724 = vrot.slane %v1063, %v1723
    %v1725 = vsel %vm1641, %v1724, %v1720
    %v1726 = vlaneseq
    %v1727 = vshrl.u32 %v1726, 7
    %v1728 = vsub.s32 %v1643, %v1727
    %v1729 = vrot.slane %v1064, %v1728
    %v1730 = vsel %vm1648, %v1729, %v1725
    %v1731 = vlaneseq
    %v1732 = vshrl.u32 %v1731, 7
    %v1733 = vsub.s32 %v1650, %v1732
    %v1734 = vrot.slane %v1065, %v1733
    %v1735 = vsel %vm1655, %v1734, %v1730
    %v1736 = vlaneseq
    %v1737 = vshrl.u32 %v1736, 7
    %v1738 = vsub.s32 %v1547, %v1737
    %v1739 = vrot.slane %v1066, %v1738
    %v1740 = vlaneseq
    %v1741 = vshrl.u32 %v1740, 7
    %v1742 = vsub.s32 %v1552, %v1741
    %v1743 = vrot.slane %v1067, %v1742
    %v1744 = vsel %vm1557, %v1743, %v1739
    %v1745 = vlaneseq
    %v1746 = vshrl.u32 %v1745, 7
    %v1747 = vsub.s32 %v1559, %v1746
    %v1748 = vrot.slane %v1068, %v1747
    %v1749 = vsel %vm1564, %v1748, %v1744
    %v1750 = vlaneseq
    %v1751 = vshrl.u32 %v1750, 7
    %v1752 = vsub.s32 %v1566, %v1751
    %v1753 = vrot.slane %v1069, %v1752
    %v1754 = vsel %vm1571, %v1753, %v1749
    %v1755 = vlaneseq
    %v1756 = vshrl.u32 %v1755, 7
    %v1757 = vsub.s32 %v1573, %v1756
    %v1758 = vrot.slane %v1070, %v1757
    %v1759 = vsel %vm1578, %v1758, %v1754
    %v1760 = vlaneseq
    %v1761 = vshrl.u32 %v1760, 7
    %v1762 = vsub.s32 %v1580, %v1761
    %v1763 = vrot.slane %v1071, %v1762
    %v1764 = vsel %vm1585, %v1763, %v1759
    %v1765 = vlaneseq
    %v1766 = vshrl.u32 %v1765, 7
    %v1767 = vsub.s32 %v1587, %v1766
    %v1768 = vrot.slane %v1072, %v1767
    %v1769 = vsel %vm1592, %v1768, %v1764
    %v1770 = vlaneseq
    %v1771 = vshrl.u32 %v1770, 7
    %v1772 = vsub.s32 %v1594, %v1771
    %v1773 = vrot.slane %v1073, %v1772
    %v1774 = vsel %vm1599, %v1773, %v1769
    %v1775 = vlaneseq
    %v1776 = vshrl.u32 %v1775, 7
    %v1777 = vsub.s32 %v1601, %v1776
    %v1778 = vrot.slane %v1074, %v1777
    %v1779 = vsel %vm1606, %v1778, %v1774
    %v1780 = vlaneseq
    %v1781 = vshrl.u32 %v1780, 7
    %v1782 = vsub.s32 %v1608, %v1781
    %v1783 = vrot.slane %v1075, %v1782
    %v1784 = vsel %vm1613, %v1783, %v1779
    %v1785 = vlaneseq
    %v1786 = vshrl.u32 %v1785, 7
    %v1787 = vsub.s32 %v1615, %v1786
    %v1788 = vrot.slane %v1076, %v1787
    %v1789 = vsel %vm1620, %v1788, %v1784
    %v1790 = vlaneseq
    %v1791 = vshrl.u32 %v1790, 7
    %v1792 = vsub.s32 %v1622, %v1791
    %v1793 = vrot.slane %v1077, %v1792
    %v1794 = vsel %vm1627, %v1793, %v1789
    %v1795 = vlaneseq
    %v1796 = vshrl.u32 %v1795, 7
    %v1797 = vsub.s32 %v1629, %v1796
    %v1798 = vrot.slane %v1078, %v1797
    %v1799 = vsel %vm1634, %v1798, %v1794
    %v1800 = vlaneseq
    %v1801 = vshrl.u32 %v1800, 7
    %v1802 = vsub.s32 %v1636, %v1801
    %v1803 = vrot.slane %v1079, %v1802
    %v1804 = vsel %vm1641, %v1803, %v1799
    %v1805 = vlaneseq
    %v1806 = vshrl.u32 %v1805, 7
    %v1807 = vsub.s32 %v1643, %v1806
    %v1808 = vrot.slane %v1080, %v1807
    %v1809 = vsel %vm1648, %v1808, %v1804
    %v1810 = vlaneseq
    %v1811 = vshrl.u32 %v1810, 7
    %v1812 = vsub.s32 %v1650, %v1811
    %v1813 = vrot.slane %v1081, %v1812
    %v1814 = vsel %vm1655, %v1813, %v1809
    %v1815 = vlaneseq
    %v1816 = vshrl.u32 %v1815, 7
    %v1817 = vsub.s32 %v1547, %v1816
    %v1818 = vrot.slane %v1082, %v1817
    %v1819 = vlaneseq
    %v1820 = vshrl.u32 %v1819, 7
    %v1821 = vsub.s32 %v1552, %v1820
    %v1822 = vrot.slane %v1083, %v1821
    %v1823 = vsel %vm1557, %v1822, %v1818
    %v1824 = vlaneseq
    %v1825 = vshrl.u32 %v1824, 7
    %v1826 = vsub.s32 %v1559, %v1825
    %v1827 = vrot.slane %v1084, %v1826
    %v1828 = vsel %vm1564, %v1827, %v1823
    %v1829 = vlaneseq
    %v1830 = vshrl.u32 %v1829, 7
    %v1831 = vsub.s32 %v1566, %v1830
    %v1832 = vrot.slane %v1085, %v1831
    %v1833 = vsel %vm1571, %v1832, %v1828
    %v1834 = vlaneseq
    %v1835 = vshrl.u32 %v1834, 7
    %v1836 = vsub.s32 %v1573, %v1835
    %v1837 = vrot.slane %v1086, %v1836
    %v1838 = vsel %vm1578, %v1837, %v1833
    %v1839 = vlaneseq
    %v1840 = vshrl.u32 %v1839, 7
    %v1841 = vsub.s32 %v1580, %v1840
    %v1842 = vrot.slane %v1087, %v1841
    %v1843 = vsel %vm1585, %v1842, %v1838
    %v1844 = vlaneseq
    %v1845 = vshrl.u32 %v1844, 7
    %v1846 = vsub.s32 %v1587, %v1845
    %v1847 = vrot.slane %v1088, %v1846
    %v1848 = vsel %vm1592, %v1847, %v1843
    %v1849 = vlaneseq
    %v1850 = vshrl.u32 %v1849, 7
    %v1851 = vsub.s32 %v1594, %v1850
    %v1852 = vrot.slane %v1089, %v1851
    %v1853 = vsel %vm1599, %v1852, %v1848
    %v1854 = vlaneseq
    %v1855 = vshrl.u32 %v1854, 7
    %v1856 = vsub.s32 %v1601, %v1855
    %v1857 = vrot.slane %v1090, %v1856
    %v1858 = vsel %vm1606, %v1857, %v1853
    %v1859 = vlaneseq
    %v1860 = vshrl.u32 %v1859, 7
    %v1861 = vsub.s32 %v1608, %v1860
    %v1862 = vrot.slane %v1091, %v1861
    %v1863 = vsel %vm1613, %v1862, %v1858
    %v1864 = vlaneseq
    %v1865 = vshrl.u32 %v1864, 7
    %v1866 = vsub.s32 %v1615, %v1865
    %v1867 = vrot.slane %v1092, %v1866
    %v1868 = vsel %vm1620, %v1867, %v1863
    %v1869 = vlaneseq
    %v1870 = vshrl.u32 %v1869, 7
    %v1871 = vsub.s32 %v1622, %v1870
    %v1872 = vrot.slane %v1093, %v1871
    %v1873 = vsel %vm1627, %v1872, %v1868
    %v1874 = vlaneseq
    %v1875 = vshrl.u32 %v1874, 7
    %v1876 = vsub.s32 %v1629, %v1875
    %v1877 = vrot.slane %v1094, %v1876
    %v1878 = vsel %vm1634, %v1877, %v1873
    %v1879 = vlaneseq
    %v1880 = vshrl.u32 %v1879, 7
    %v1881 = vsub.s32 %v1636, %v1880
    %v1882 = vrot.slane %v1095, %v1881
    %v1883 = vsel %vm1641, %v1882, %v1878
    %v1884 = vlaneseq
    %v1885 = vshrl.u32 %v1884, 7
    %v1886 = vsub.s32 %v1643, %v1885
    %v1887 = vrot.slane %v1096, %v1886
    %v1888 = vsel %vm1648, %v1887, %v1883
    %v1889 = vlaneseq
    %v1890 = vshrl.u32 %v1889, 7
    %v1891 = vsub.s32 %v1650, %v1890
    %v1892 = vrot.slane %v1097, %v1891
    %v1893 = vsel %vm1655, %v1892, %v1888
    %v1894 = vlaneseq
    %v1895 = vshrl.u32 %v1894, 7
    %v1896 = vsub.s32 %v1547, %v1895
    %v1897 = vrot.slane %v1098, %v1896
    %v1898 = vlaneseq
    %v1899 = vshrl.u32 %v1898, 7
    %v1900 = vsub.s32 %v1552, %v1899
    %v1901 = vrot.slane %v1099, %v1900
    %v1902 = vsel %vm1557, %v1901, %v1897
    %v1903 = vlaneseq
    %v1904 = vshrl.u32 %v1903, 7
    %v1905 = vsub.s32 %v1559, %v1904
    %v1906 = vrot.slane %v1100, %v1905
    %v1907 = vsel %vm1564, %v1906, %v1902
    %v1908 = vlaneseq
    %v1909 = vshrl.u32 %v1908, 7
    %v1910 = vsub.s32 %v1566, %v1909
    %v1911 = vrot.slane %v1101, %v1910
    %v1912 = vsel %vm1571, %v1911, %v1907
    %v1913 = vlaneseq
    %v1914 = vshrl.u32 %v1913, 7
    %v1915 = vsub.s32 %v1573, %v1914
    %v1916 = vrot.slane %v1102, %v1915
    %v1917 = vsel %vm1578, %v1916, %v1912
    %v1918 = vlaneseq
    %v1919 = vshrl.u32 %v1918, 7
    %v1920 = vsub.s32 %v1580, %v1919
    %v1921 = vrot.slane %v1103, %v1920
    %v1922 = vsel %vm1585, %v1921, %v1917
    %v1923 = vlaneseq
    %v1924 = vshrl.u32 %v1923, 7
    %v1925 = vsub.s32 %v1587, %v1924
    %v1926 = vrot.slane %v1104, %v1925
    %v1927 = vsel %vm1592, %v1926, %v1922
    %v1928 = vlaneseq
    %v1929 = vshrl.u32 %v1928, 7
    %v1930 = vsub.s32 %v1594, %v1929
    %v1931 = vrot.slane %v1105, %v1930
    %v1932 = vsel %vm1599, %v1931, %v1927
    %v1933 = vlaneseq
    %v1934 = vshrl.u32 %v1933, 7
    %v1935 = vsub.s32 %v1601, %v1934
    %v1936 = vrot.slane %v1106, %v1935
    %v1937 = vsel %vm1606, %v1936, %v1932
    %v1938 = vlaneseq
    %v1939 = vshrl.u32 %v1938, 7
    %v1940 = vsub.s32 %v1608, %v1939
    %v1941 = vrot.slane %v1107, %v1940
    %v1942 = vsel %vm1613, %v1941, %v1937
    %v1943 = vlaneseq
    %v1944 = vshrl.u32 %v1943, 7
    %v1945 = vsub.s32 %v1615, %v1944
    %v1946 = vrot.slane %v1108, %v1945
    %v1947 = vsel %vm1620, %v1946, %v1942
    %v1948 = vlaneseq
    %v1949 = vshrl.u32 %v1948, 7
    %v1950 = vsub.s32 %v1622, %v1949
    %v1951 = vrot.slane %v1109, %v1950
    %v1952 = vsel %vm1627, %v1951, %v1947
    %v1953 = vlaneseq
    %v1954 = vshrl.u32 %v1953, 7
    %v1955 = vsub.s32 %v1629, %v1954
    %v1956 = vrot.slane %v1110, %v1955
    %v1957 = vsel %vm1634, %v1956, %v1952
    %v1958 = vlaneseq
    %v1959 = vshrl.u32 %v1958, 7
    %v1960 = vsub.s32 %v1636, %v1959
    %v1961 = vrot.slane %v1111, %v1960
    %v1962 = vsel %vm1641, %v1961, %v1957
    %v1963 = vlaneseq
    %v1964 = vshrl.u32 %v1963, 7
    %v1965 = vsub.s32 %v1643, %v1964
    %v1966 = vrot.slane %v1112, %v1965
    %v1967 = vsel %vm1648, %v1966, %v1962
    %v1968 = vlaneseq
    %v1969 = vshrl.u32 %v1968, 7
    %v1970 = vsub.s32 %v1650, %v1969
    %v1971 = vrot.slane %v1113, %v1970
    %v1972 = vsel %vm1655, %v1971, %v1967
    %v1973 = vlaneseq
    %v1974 = vshrl.u32 %v1973, 7
    %v1975 = vsub.s32 %v1547, %v1974
    %v1976 = vrot.slane %v1114, %v1975
    %v1977 = vlaneseq
    %v1978 = vshrl.u32 %v1977, 7
    %v1979 = vsub.s32 %v1552, %v1978
    %v1980 = vrot.slane %v1115, %v1979
    %v1981 = vsel %vm1557, %v1980, %v1976
    %v1982 = vlaneseq
    %v1983 = vshrl.u32 %v1982, 7
    %v1984 = vsub.s32 %v1559, %v1983
    %v1985 = vrot.slane %v1116, %v1984
    %v1986 = vsel %vm1564, %v1985, %v1981
    %v1987 = vlaneseq
    %v1988 = vshrl.u32 %v1987, 7
    %v1989 = vsub.s32 %v1566, %v1988
    %v1990 = vrot.slane %v1117, %v1989
    %v1991 = vsel %vm1571, %v1990, %v1986
    %v1992 = vlaneseq
    %v1993 = vshrl.u32 %v1992, 7
    %v1994 = vsub.s32 %v1573, %v1993
    %v1995 = vrot.slane %v1118, %v1994
    %v1996 = vsel %vm1578, %v1995, %v1991
    %v1997 = vlaneseq
    %v1998 = vshrl.u32 %v1997, 7
    %v1999 = vsub.s32 %v1580, %v1998
    %v2000 = vrot.slane %v1119, %v1999
    %v2001 = vsel %vm1585, %v2000, %v1996
    %v2002 = vlaneseq
    %v2003 = vshrl.u32 %v2002, 7
    %v2004 = vsub.s32 %v1587, %v2003
    %v2005 = vrot.slane %v1120, %v2004
    %v2006 = vsel %vm1592, %v2005, %v2001
    %v2007 = vlaneseq
    %v2008 = vshrl.u32 %v2007, 7
    %v2009 = vsub.s32 %v1594, %v2008
    %v2010 = vrot.slane %v1121, %v2009
    %v2011 = vsel %vm1599, %v2010, %v2006
    %v2012 = vlaneseq
    %v2013 = vshrl.u32 %v2012, 7
    %v2014 = vsub.s32 %v1601, %v2013
    %v2015 = vrot.slane %v1122, %v2014
    %v2016 = vsel %vm1606, %v2015, %v2011
    %v2017 = vlaneseq
    %v2018 = vshrl.u32 %v2017, 7
    %v2019 = vsub.s32 %v1608, %v2018
    %v2020 = vrot.slane %v1123, %v2019
    %v2021 = vsel %vm1613, %v2020, %v2016
    %v2022 = vlaneseq
    %v2023 = vshrl.u32 %v2022, 7
    %v2024 = vsub.s32 %v1615, %v2023
    %v2025 = vrot.slane %v1124, %v2024
    %v2026 = vsel %vm1620, %v2025, %v2021
    %v2027 = vlaneseq
    %v2028 = vshrl.u32 %v2027, 7
    %v2029 = vsub.s32 %v1622, %v2028
    %v2030 = vrot.slane %v1125, %v2029
    %v2031 = vsel %vm1627, %v2030, %v2026
    %v2032 = vlaneseq
    %v2033 = vshrl.u32 %v2032, 7
    %v2034 = vsub.s32 %v1629, %v2033
    %v2035 = vrot.slane %v1126, %v2034
    %v2036 = vsel %vm1634, %v2035, %v2031
    %v2037 = vlaneseq
    %v2038 = vshrl.u32 %v2037, 7
    %v2039 = vsub.s32 %v1636, %v2038
    %v2040 = vrot.slane %v1127, %v2039
    %v2041 = vsel %vm1641, %v2040, %v2036
    %v2042 = vlaneseq
    %v2043 = vshrl.u32 %v2042, 7
    %v2044 = vsub.s32 %v1643, %v2043
    %v2045 = vrot.slane %v1128, %v2044
    %v2046 = vsel %vm1648, %v2045, %v2041
    %v2047 = vlaneseq
    %v2048 = vshrl.u32 %v2047, 7
    %v2049 = vsub.s32 %v1650, %v2048
    %v2050 = vrot.slane %v1129, %v2049
    %v2051 = vsel %vm1655, %v2050, %v2046
    %v2052 = vlaneseq
    %v2053 = vshrl.u32 %v2052, 7
    %v2054 = vsub.s32 %v1547, %v2053
    %v2055 = vrot.slane %v1130, %v2054
    %v2056 = vlaneseq
    %v2057 = vshrl.u32 %v2056, 7
    %v2058 = vsub.s32 %v1552, %v2057
    %v2059 = vrot.slane %v1131, %v2058
    %v2060 = vsel %vm1557, %v2059, %v2055
    %v2061 = vlaneseq
    %v2062 = vshrl.u32 %v2061, 7
    %v2063 = vsub.s32 %v1559, %v2062
    %v2064 = vrot.slane %v1132, %v2063
    %v2065 = vsel %vm1564, %v2064, %v2060
    %v2066 = vlaneseq
    %v2067 = vshrl.u32 %v2066, 7
    %v2068 = vsub.s32 %v1566, %v2067
    %v2069 = vrot.slane %v1133, %v2068
    %v2070 = vsel %vm1571, %v2069, %v2065
    %v2071 = vlaneseq
    %v2072 = vshrl.u32 %v2071, 7
    %v2073 = vsub.s32 %v1573, %v2072
    %v2074 = vrot.slane %v1134, %v2073
    %v2075 = vsel %vm1578, %v2074, %v2070
    %v2076 = vlaneseq
    %v2077 = vshrl.u32 %v2076, 7
    %v2078 = vsub.s32 %v1580, %v2077
    %v2079 = vrot.slane %v1135, %v2078
    %v2080 = vsel %vm1585, %v2079, %v2075
    %v2081 = vlaneseq
    %v2082 = vshrl.u32 %v2081, 7
    %v2083 = vsub.s32 %v1587, %v2082
    %v2084 = vrot.slane %v1136, %v2083
    %v2085 = vsel %vm1592, %v2084, %v2080
    %v2086 = vlaneseq
    %v2087 = vshrl.u32 %v2086, 7
    %v2088 = vsub.s32 %v1594, %v2087
    %v2089 = vrot.slane %v1137, %v2088
    %v2090 = vsel %vm1599, %v2089, %v2085
    %v2091 = vlaneseq
    %v2092 = vshrl.u32 %v2091, 7
    %v2093 = vsub.s32 %v1601, %v2092
    %v2094 = vrot.slane %v1138, %v2093
    %v2095 = vsel %vm1606, %v2094, %v2090
    %v2096 = vlaneseq
    %v2097 = vshrl.u32 %v2096, 7
    %v2098 = vsub.s32 %v1608, %v2097
    %v2099 = vrot.slane %v1139, %v2098
    %v2100 = vsel %vm1613, %v2099, %v2095
    %v2101 = vlaneseq
    %v2102 = vshrl.u32 %v2101, 7
    %v2103 = vsub.s32 %v1615, %v2102
    %v2104 = vrot.slane %v1140, %v2103
    %v2105 = vsel %vm1620, %v2104, %v2100
    %v2106 = vlaneseq
    %v2107 = vshrl.u32 %v2106, 7
    %v2108 = vsub.s32 %v1622, %v2107
    %v2109 = vrot.slane %v1141, %v2108
    %v2110 = vsel %vm1627, %v2109, %v2105
    %v2111 = vlaneseq
    %v2112 = vshrl.u32 %v2111, 7
    %v2113 = vsub.s32 %v1629, %v2112
    %v2114 = vrot.slane %v1142, %v2113
    %v2115 = vsel %vm1634, %v2114, %v2110
    %v2116 = vlaneseq
    %v2117 = vshrl.u32 %v2116, 7
    %v2118 = vsub.s32 %v1636, %v2117
    %v2119 = vrot.slane %v1143, %v2118
    %v2120 = vsel %vm1641, %v2119, %v2115
    %v2121 = vlaneseq
    %v2122 = vshrl.u32 %v2121, 7
    %v2123 = vsub.s32 %v1643, %v2122
    %v2124 = vrot.slane %v1144, %v2123
    %v2125 = vsel %vm1648, %v2124, %v2120
    %v2126 = vlaneseq
    %v2127 = vshrl.u32 %v2126, 7
    %v2128 = vsub.s32 %v1650, %v2127
    %v2129 = vrot.slane %v1145, %v2128
    %v2130 = vsel %vm1655, %v2129, %v2125
    %v2131 = vlaneseq
    %v2132 = vshrl.u32 %v2131, 7
    %v2133 = vsub.s32 %v1547, %v2132
    %v2134 = vrot.slane %v1146, %v2133
    %v2135 = vlaneseq
    %v2136 = vshrl.u32 %v2135, 7
    %v2137 = vsub.s32 %v1552, %v2136
    %v2138 = vrot.slane %v1147, %v2137
    %v2139 = vsel %vm1557, %v2138, %v2134
    %v2140 = vlaneseq
    %v2141 = vshrl.u32 %v2140, 7
    %v2142 = vsub.s32 %v1559, %v2141
    %v2143 = vrot.slane %v1148, %v2142
    %v2144 = vsel %vm1564, %v2143, %v2139
    %v2145 = vlaneseq
    %v2146 = vshrl.u32 %v2145, 7
    %v2147 = vsub.s32 %v1566, %v2146
    %v2148 = vrot.slane %v1149, %v2147
    %v2149 = vsel %vm1571, %v2148, %v2144
    %v2150 = vlaneseq
    %v2151 = vshrl.u32 %v2150, 7
    %v2152 = vsub.s32 %v1573, %v2151
    %v2153 = vrot.slane %v1150, %v2152
    %v2154 = vsel %vm1578, %v2153, %v2149
    %v2155 = vlaneseq
    %v2156 = vshrl.u32 %v2155, 7
    %v2157 = vsub.s32 %v1580, %v2156
    %v2158 = vrot.slane %v1151, %v2157
    %v2159 = vsel %vm1585, %v2158, %v2154
    %v2160 = vlaneseq
    %v2161 = vshrl.u32 %v2160, 7
    %v2162 = vsub.s32 %v1587, %v2161
    %v2163 = vrot.slane %v1152, %v2162
    %v2164 = vsel %vm1592, %v2163, %v2159
    %v2165 = vlaneseq
    %v2166 = vshrl.u32 %v2165, 7
    %v2167 = vsub.s32 %v1594, %v2166
    %v2168 = vrot.slane %v1153, %v2167
    %v2169 = vsel %vm1599, %v2168, %v2164
    %v2170 = vlaneseq
    %v2171 = vshrl.u32 %v2170, 7
    %v2172 = vsub.s32 %v1601, %v2171
    %v2173 = vrot.slane %v1154, %v2172
    %v2174 = vsel %vm1606, %v2173, %v2169
    %v2175 = vlaneseq
    %v2176 = vshrl.u32 %v2175, 7
    %v2177 = vsub.s32 %v1608, %v2176
    %v2178 = vrot.slane %v1155, %v2177
    %v2179 = vsel %vm1613, %v2178, %v2174
    %v2180 = vlaneseq
    %v2181 = vshrl.u32 %v2180, 7
    %v2182 = vsub.s32 %v1615, %v2181
    %v2183 = vrot.slane %v1156, %v2182
    %v2184 = vsel %vm1620, %v2183, %v2179
    %v2185 = vlaneseq
    %v2186 = vshrl.u32 %v2185, 7
    %v2187 = vsub.s32 %v1622, %v2186
    %v2188 = vrot.slane %v1157, %v2187
    %v2189 = vsel %vm1627, %v2188, %v2184
    %v2190 = vlaneseq
    %v2191 = vshrl.u32 %v2190, 7
    %v2192 = vsub.s32 %v1629, %v2191
    %v2193 = vrot.slane %v1158, %v2192
    %v2194 = vsel %vm1634, %v2193, %v2189
    %v2195 = vlaneseq
    %v2196 = vshrl.u32 %v2195, 7
    %v2197 = vsub.s32 %v1636, %v2196
    %v2198 = vrot.slane %v1159, %v2197
    %v2199 = vsel %vm1641, %v2198, %v2194
    %v2200 = vlaneseq
    %v2201 = vshrl.u32 %v2200, 7
    %v2202 = vsub.s32 %v1643, %v2201
    %v2203 = vrot.slane %v1160, %v2202
    %v2204 = vsel %vm1648, %v2203, %v2199
    %v2205 = vlaneseq
    %v2206 = vshrl.u32 %v2205, 7
    %v2207 = vsub.s32 %v1650, %v2206
    %v2208 = vrot.slane %v1161, %v2207
    %v2209 = vsel %vm1655, %v2208, %v2204
    %v2210 = vlaneseq
    %v2211 = vshrl.u32 %v2210, 7
    %v2212 = vsub.s32 %v1547, %v2211
    %v2213 = vrot.slane %v1162, %v2212
    %v2214 = vlaneseq
    %v2215 = vshrl.u32 %v2214, 7
    %v2216 = vsub.s32 %v1552, %v2215
    %v2217 = vrot.slane %v1163, %v2216
    %v2218 = vsel %vm1557, %v2217, %v2213
    %v2219 = vlaneseq
    %v2220 = vshrl.u32 %v2219, 7
    %v2221 = vsub.s32 %v1559, %v2220
    %v2222 = vrot.slane %v1164, %v2221
    %v2223 = vsel %vm1564, %v2222, %v2218
    %v2224 = vlaneseq
    %v2225 = vshrl.u32 %v2224, 7
    %v2226 = vsub.s32 %v1566, %v2225
    %v2227 = vrot.slane %v1165, %v2226
    %v2228 = vsel %vm1571, %v2227, %v2223
    %v2229 = vlaneseq
    %v2230 = vshrl.u32 %v2229, 7
    %v2231 = vsub.s32 %v1573, %v2230
    %v2232 = vrot.slane %v1166, %v2231
    %v2233 = vsel %vm1578, %v2232, %v2228
    %v2234 = vlaneseq
    %v2235 = vshrl.u32 %v2234, 7
    %v2236 = vsub.s32 %v1580, %v2235
    %v2237 = vrot.slane %v1167, %v2236
    %v2238 = vsel %vm1585, %v2237, %v2233
    %v2239 = vlaneseq
    %v2240 = vshrl.u32 %v2239, 7
    %v2241 = vsub.s32 %v1587, %v2240
    %v2242 = vrot.slane %v1168, %v2241
    %v2243 = vsel %vm1592, %v2242, %v2238
    %v2244 = vlaneseq
    %v2245 = vshrl.u32 %v2244, 7
    %v2246 = vsub.s32 %v1594, %v2245
    %v2247 = vrot.slane %v1169, %v2246
    %v2248 = vsel %vm1599, %v2247, %v2243
    %v2249 = vlaneseq
    %v2250 = vshrl.u32 %v2249, 7
    %v2251 = vsub.s32 %v1601, %v2250
    %v2252 = vrot.slane %v1170, %v2251
    %v2253 = vsel %vm1606, %v2252, %v2248
    %v2254 = vlaneseq
    %v2255 = vshrl.u32 %v2254, 7
    %v2256 = vsub.s32 %v1608, %v2255
    %v2257 = vrot.slane %v1171, %v2256
    %v2258 = vsel %vm1613, %v2257, %v2253
    %v2259 = vlaneseq
    %v2260 = vshrl.u32 %v2259, 7
    %v2261 = vsub.s32 %v1615, %v2260
    %v2262 = vrot.slane %v1172, %v2261
    %v2263 = vsel %vm1620, %v2262, %v2258
    %v2264 = vlaneseq
    %v2265 = vshrl.u32 %v2264, 7
    %v2266 = vsub.s32 %v1622, %v2265
    %v2267 = vrot.slane %v1173, %v2266
    %v2268 = vsel %vm1627, %v2267, %v2263
    %v2269 = vlaneseq
    %v2270 = vshrl.u32 %v2269, 7
    %v2271 = vsub.s32 %v1629, %v2270
    %v2272 = vrot.slane %v1174, %v2271
    %v2273 = vsel %vm1634, %v2272, %v2268
    %v2274 = vlaneseq
    %v2275 = vshrl.u32 %v2274, 7
    %v2276 = vsub.s32 %v1636, %v2275
    %v2277 = vrot.slane %v1175, %v2276
    %v2278 = vsel %vm1641, %v2277, %v2273
    %v2279 = vlaneseq
    %v2280 = vshrl.u32 %v2279, 7
    %v2281 = vsub.s32 %v1643, %v2280
    %v2282 = vrot.slane %v1176, %v2281
    %v2283 = vsel %vm1648, %v2282, %v2278
    %v2284 = vlaneseq
    %v2285 = vshrl.u32 %v2284, 7
    %v2286 = vsub.s32 %v1650, %v2285
    %v2287 = vrot.slane %v1177, %v2286
    %v2288 = vsel %vm1655, %v2287, %v2283
    %v2289 = vlaneseq
    %v2290 = vshrl.u32 %v2289, 7
    %v2291 = vsub.s32 %v1547, %v2290
    %v2292 = vrot.slane %v1178, %v2291
    %v2293 = vlaneseq
    %v2294 = vshrl.u32 %v2293, 7
    %v2295 = vsub.s32 %v1552, %v2294
    %v2296 = vrot.slane %v1179, %v2295
    %v2297 = vsel %vm1557, %v2296, %v2292
    %v2298 = vlaneseq
    %v2299 = vshrl.u32 %v2298, 7
    %v2300 = vsub.s32 %v1559, %v2299
    %v2301 = vrot.slane %v1180, %v2300
    %v2302 = vsel %vm1564, %v2301, %v2297
    %v2303 = vlaneseq
    %v2304 = vshrl.u32 %v2303, 7
    %v2305 = vsub.s32 %v1566, %v2304
    %v2306 = vrot.slane %v1181, %v2305
    %v2307 = vsel %vm1571, %v2306, %v2302
    %v2308 = vlaneseq
    %v2309 = vshrl.u32 %v2308, 7
    %v2310 = vsub.s32 %v1573, %v2309
    %v2311 = vrot.slane %v1182, %v2310
    %v2312 = vsel %vm1578, %v2311, %v2307
    %v2313 = vlaneseq
    %v2314 = vshrl.u32 %v2313, 7
    %v2315 = vsub.s32 %v1580, %v2314
    %v2316 = vrot.slane %v1183, %v2315
    %v2317 = vsel %vm1585, %v2316, %v2312
    %v2318 = vlaneseq
    %v2319 = vshrl.u32 %v2318, 7
    %v2320 = vsub.s32 %v1587, %v2319
    %v2321 = vrot.slane %v1184, %v2320
    %v2322 = vsel %vm1592, %v2321, %v2317
    %v2323 = vlaneseq
    %v2324 = vshrl.u32 %v2323, 7
    %v2325 = vsub.s32 %v1594, %v2324
    %v2326 = vrot.slane %v1185, %v2325
    %v2327 = vsel %vm1599, %v2326, %v2322
    %v2328 = vlaneseq
    %v2329 = vshrl.u32 %v2328, 7
    %v2330 = vsub.s32 %v1601, %v2329
    %v2331 = vrot.slane %v1186, %v2330
    %v2332 = vsel %vm1606, %v2331, %v2327
    %v2333 = vlaneseq
    %v2334 = vshrl.u32 %v2333, 7
    %v2335 = vsub.s32 %v1608, %v2334
    %v2336 = vrot.slane %v1187, %v2335
    %v2337 = vsel %vm1613, %v2336, %v2332
    %v2338 = vlaneseq
    %v2339 = vshrl.u32 %v2338, 7
    %v2340 = vsub.s32 %v1615, %v2339
    %v2341 = vrot.slane %v1188, %v2340
    %v2342 = vsel %vm1620, %v2341, %v2337
    %v2343 = vlaneseq
    %v2344 = vshrl.u32 %v2343, 7
    %v2345 = vsub.s32 %v1622, %v2344
    %v2346 = vrot.slane %v1189, %v2345
    %v2347 = vsel %vm1627, %v2346, %v2342
    %v2348 = vlaneseq
    %v2349 = vshrl.u32 %v2348, 7
    %v2350 = vsub.s32 %v1629, %v2349
    %v2351 = vrot.slane %v1190, %v2350
    %v2352 = vsel %vm1634, %v2351, %v2347
    %v2353 = vlaneseq
    %v2354 = vshrl.u32 %v2353, 7
    %v2355 = vsub.s32 %v1636, %v2354
    %v2356 = vrot.slane %v1191, %v2355
    %v2357 = vsel %vm1641, %v2356, %v2352
    %v2358 = vlaneseq
    %v2359 = vshrl.u32 %v2358, 7
    %v2360 = vsub.s32 %v1643, %v2359
    %v2361 = vrot.slane %v1192, %v2360
    %v2362 = vsel %vm1648, %v2361, %v2357
    %v2363 = vlaneseq
    %v2364 = vshrl.u32 %v2363, 7
    %v2365 = vsub.s32 %v1650, %v2364
    %v2366 = vrot.slane %v1193, %v2365
    %v2367 = vsel %vm1655, %v2366, %v2362
    %v2368 = vlaneseq
    %v2369 = vshrl.u32 %v2368, 7
    %v2370 = vsub.s32 %v1547, %v2369
    %v2371 = vrot.slane %v1194, %v2370
    %v2372 = vlaneseq
    %v2373 = vshrl.u32 %v2372, 7
    %v2374 = vsub.s32 %v1552, %v2373
    %v2375 = vrot.slane %v1195, %v2374
    %v2376 = vsel %vm1557, %v2375, %v2371
    %v2377 = vlaneseq
    %v2378 = vshrl.u32 %v2377, 7
    %v2379 = vsub.s32 %v1559, %v2378
    %v2380 = vrot.slane %v1196, %v2379
    %v2381 = vsel %vm1564, %v2380, %v2376
    %v2382 = vlaneseq
    %v2383 = vshrl.u32 %v2382, 7
    %v2384 = vsub.s32 %v1566, %v2383
    %v2385 = vrot.slane %v1197, %v2384
    %v2386 = vsel %vm1571, %v2385, %v2381
    %v2387 = vlaneseq
    %v2388 = vshrl.u32 %v2387, 7
    %v2389 = vsub.s32 %v1573, %v2388
    %v2390 = vrot.slane %v1198, %v2389
    %v2391 = vsel %vm1578, %v2390, %v2386
    %v2392 = vlaneseq
    %v2393 = vshrl.u32 %v2392, 7
    %v2394 = vsub.s32 %v1580, %v2393
    %v2395 = vrot.slane %v1199, %v2394
    %v2396 = vsel %vm1585, %v2395, %v2391
    %v2397 = vlaneseq
    %v2398 = vshrl.u32 %v2397, 7
    %v2399 = vsub.s32 %v1587, %v2398
    %v2400 = vrot.slane %v1200, %v2399
    %v2401 = vsel %vm1592, %v2400, %v2396
    %v2402 = vlaneseq
    %v2403 = vshrl.u32 %v2402, 7
    %v2404 = vsub.s32 %v1594, %v2403
    %v2405 = vrot.slane %v1201, %v2404
    %v2406 = vsel %vm1599, %v2405, %v2401
    %v2407 = vlaneseq
    %v2408 = vshrl.u32 %v2407, 7
    %v2409 = vsub.s32 %v1601, %v2408
    %v2410 = vrot.slane %v1202, %v2409
    %v2411 = vsel %vm1606, %v2410, %v2406
    %v2412 = vlaneseq
    %v2413 = vshrl.u32 %v2412, 7
    %v2414 = vsub.s32 %v1608, %v2413
    %v2415 = vrot.slane %v1203, %v2414
    %v2416 = vsel %vm1613, %v2415, %v2411
    %v2417 = vlaneseq
    %v2418 = vshrl.u32 %v2417, 7
    %v2419 = vsub.s32 %v1615, %v2418
    %v2420 = vrot.slane %v1204, %v2419
    %v2421 = vsel %vm1620, %v2420, %v2416
    %v2422 = vlaneseq
    %v2423 = vshrl.u32 %v2422, 7
    %v2424 = vsub.s32 %v1622, %v2423
    %v2425 = vrot.slane %v1205, %v2424
    %v2426 = vsel %vm1627, %v2425, %v2421
    %v2427 = vlaneseq
    %v2428 = vshrl.u32 %v2427, 7
    %v2429 = vsub.s32 %v1629, %v2428
    %v2430 = vrot.slane %v1206, %v2429
    %v2431 = vsel %vm1634, %v2430, %v2426
    %v2432 = vlaneseq
    %v2433 = vshrl.u32 %v2432, 7
    %v2434 = vsub.s32 %v1636, %v2433
    %v2435 = vrot.slane %v1207, %v2434
    %v2436 = vsel %vm1641, %v2435, %v2431
    %v2437 = vlaneseq
    %v2438 = vshrl.u32 %v2437, 7
    %v2439 = vsub.s32 %v1643, %v2438
    %v2440 = vrot.slane %v1208, %v2439
    %v2441 = vsel %vm1648, %v2440, %v2436
    %v2442 = vlaneseq
    %v2443 = vshrl.u32 %v2442, 7
    %v2444 = vsub.s32 %v1650, %v2443
    %v2445 = vrot.slane %v1209, %v2444
    %v2446 = vsel %vm1655, %v2445, %v2441
    %v2447 = vlaneseq
    %v2448 = vshrl.u32 %v2447, 7
    %v2449 = vsub.s32 %v1547, %v2448
    %v2450 = vrot.slane %v1210, %v2449
    %v2451 = vlaneseq
    %v2452 = vshrl.u32 %v2451, 7
    %v2453 = vsub.s32 %v1552, %v2452
    %v2454 = vrot.slane %v1211, %v2453
    %v2455 = vsel %vm1557, %v2454, %v2450
    %v2456 = vlaneseq
    %v2457 = vshrl.u32 %v2456, 7
    %v2458 = vsub.s32 %v1559, %v2457
    %v2459 = vrot.slane %v1212, %v2458
    %v2460 = vsel %vm1564, %v2459, %v2455
    %v2461 = vlaneseq
    %v2462 = vshrl.u32 %v2461, 7
    %v2463 = vsub.s32 %v1566, %v2462
    %v2464 = vrot.slane %v1213, %v2463
    %v2465 = vsel %vm1571, %v2464, %v2460
    %v2466 = vlaneseq
    %v2467 = vshrl.u32 %v2466, 7
    %v2468 = vsub.s32 %v1573, %v2467
    %v2469 = vrot.slane %v1214, %v2468
    %v2470 = vsel %vm1578, %v2469, %v2465
    %v2471 = vlaneseq
    %v2472 = vshrl.u32 %v2471, 7
    %v2473 = vsub.s32 %v1580, %v2472
    %v2474 = vrot.slane %v1215, %v2473
    %v2475 = vsel %vm1585, %v2474, %v2470
    %v2476 = vlaneseq
    %v2477 = vshrl.u32 %v2476, 7
    %v2478 = vsub.s32 %v1587, %v2477
    %v2479 = vrot.slane %v1216, %v2478
    %v2480 = vsel %vm1592, %v2479, %v2475
    %v2481 = vlaneseq
    %v2482 = vshrl.u32 %v2481, 7
    %v2483 = vsub.s32 %v1594, %v2482
    %v2484 = vrot.slane %v1217, %v2483
    %v2485 = vsel %vm1599, %v2484, %v2480
    %v2486 = vlaneseq
    %v2487 = vshrl.u32 %v2486, 7
    %v2488 = vsub.s32 %v1601, %v2487
    %v2489 = vrot.slane %v1218, %v2488
    %v2490 = vsel %vm1606, %v2489, %v2485
    %v2491 = vlaneseq
    %v2492 = vshrl.u32 %v2491, 7
    %v2493 = vsub.s32 %v1608, %v2492
    %v2494 = vrot.slane %v1219, %v2493
    %v2495 = vsel %vm1613, %v2494, %v2490
    %v2496 = vlaneseq
    %v2497 = vshrl.u32 %v2496, 7
    %v2498 = vsub.s32 %v1615, %v2497
    %v2499 = vrot.slane %v1220, %v2498
    %v2500 = vsel %vm1620, %v2499, %v2495
    %v2501 = vlaneseq
    %v2502 = vshrl.u32 %v2501, 7
    %v2503 = vsub.s32 %v1622, %v2502
    %v2504 = vrot.slane %v1221, %v2503
    %v2505 = vsel %vm1627, %v2504, %v2500
    %v2506 = vlaneseq
    %v2507 = vshrl.u32 %v2506, 7
    %v2508 = vsub.s32 %v1629, %v2507
    %v2509 = vrot.slane %v1222, %v2508
    %v2510 = vsel %vm1634, %v2509, %v2505
    %v2511 = vlaneseq
    %v2512 = vshrl.u32 %v2511, 7
    %v2513 = vsub.s32 %v1636, %v2512
    %v2514 = vrot.slane %v1223, %v2513
    %v2515 = vsel %vm1641, %v2514, %v2510
    %v2516 = vlaneseq
    %v2517 = vshrl.u32 %v2516, 7
    %v2518 = vsub.s32 %v1643, %v2517
    %v2519 = vrot.slane %v1224, %v2518
    %v2520 = vsel %vm1648, %v2519, %v2515
    %v2521 = vlaneseq
    %v2522 = vshrl.u32 %v2521, 7
    %v2523 = vsub.s32 %v1650, %v2522
    %v2524 = vrot.slane %v1225, %v2523
    %v2525 = vsel %vm1655, %v2524, %v2520
    %v2526 = vlaneseq
    %v2527 = vshrl.u32 %v2526, 7
    %v2528 = vsub.s32 %v1547, %v2527
    %v2529 = vrot.slane %v1226, %v2528
    %v2530 = vlaneseq
    %v2531 = vshrl.u32 %v2530, 7
    %v2532 = vsub.s32 %v1552, %v2531
    %v2533 = vrot.slane %v1227, %v2532
    %v2534 = vsel %vm1557, %v2533, %v2529
    %v2535 = vlaneseq
    %v2536 = vshrl.u32 %v2535, 7
    %v2537 = vsub.s32 %v1559, %v2536
    %v2538 = vrot.slane %v1228, %v2537
    %v2539 = vsel %vm1564, %v2538, %v2534
    %v2540 = vlaneseq
    %v2541 = vshrl.u32 %v2540, 7
    %v2542 = vsub.s32 %v1566, %v2541
    %v2543 = vrot.slane %v1229, %v2542
    %v2544 = vsel %vm1571, %v2543, %v2539
    %v2545 = vlaneseq
    %v2546 = vshrl.u32 %v2545, 7
    %v2547 = vsub.s32 %v1573, %v2546
    %v2548 = vrot.slane %v1230, %v2547
    %v2549 = vsel %vm1578, %v2548, %v2544
    %v2550 = vlaneseq
    %v2551 = vshrl.u32 %v2550, 7
    %v2552 = vsub.s32 %v1580, %v2551
    %v2553 = vrot.slane %v1231, %v2552
    %v2554 = vsel %vm1585, %v2553, %v2549
    %v2555 = vlaneseq
    %v2556 = vshrl.u32 %v2555, 7
    %v2557 = vsub.s32 %v1587, %v2556
    %v2558 = vrot.slane %v1232, %v2557
    %v2559 = vsel %vm1592, %v2558, %v2554
    %v2560 = vlaneseq
    %v2561 = vshrl.u32 %v2560, 7
    %v2562 = vsub.s32 %v1594, %v2561
    %v2563 = vrot.slane %v1233, %v2562
    %v2564 = vsel %vm1599, %v2563, %v2559
    %v2565 = vlaneseq
    %v2566 = vshrl.u32 %v2565, 7
    %v2567 = vsub.s32 %v1601, %v2566
    %v2568 = vrot.slane %v1234, %v2567
    %v2569 = vsel %vm1606, %v2568, %v2564
    %v2570 = vlaneseq
    %v2571 = vshrl.u32 %v2570, 7
    %v2572 = vsub.s32 %v1608, %v2571
    %v2573 = vrot.slane %v1235, %v2572
    %v2574 = vsel %vm1613, %v2573, %v2569
    %v2575 = vlaneseq
    %v2576 = vshrl.u32 %v2575, 7
    %v2577 = vsub.s32 %v1615, %v2576
    %v2578 = vrot.slane %v1236, %v2577
    %v2579 = vsel %vm1620, %v2578, %v2574
    %v2580 = vlaneseq
    %v2581 = vshrl.u32 %v2580, 7
    %v2582 = vsub.s32 %v1622, %v2581
    %v2583 = vrot.slane %v1237, %v2582
    %v2584 = vsel %vm1627, %v2583, %v2579
    %v2585 = vlaneseq
    %v2586 = vshrl.u32 %v2585, 7
    %v2587 = vsub.s32 %v1629, %v2586
    %v2588 = vrot.slane %v1238, %v2587
    %v2589 = vsel %vm1634, %v2588, %v2584
    %v2590 = vlaneseq
    %v2591 = vshrl.u32 %v2590, 7
    %v2592 = vsub.s32 %v1636, %v2591
    %v2593 = vrot.slane %v1239, %v2592
    %v2594 = vsel %vm1641, %v2593, %v2589
    %v2595 = vlaneseq
    %v2596 = vshrl.u32 %v2595, 7
    %v2597 = vsub.s32 %v1643, %v2596
    %v2598 = vrot.slane %v1240, %v2597
    %v2599 = vsel %vm1648, %v2598, %v2594
    %v2600 = vlaneseq
    %v2601 = vshrl.u32 %v2600, 7
    %v2602 = vsub.s32 %v1650, %v2601
    %v2603 = vrot.slane %v1241, %v2602
    %v2604 = vsel %vm1655, %v2603, %v2599
    %v2605 = vlaneseq
    %v2606 = vshrl.u32 %v2605, 7
    %v2607 = vsub.s32 %v1547, %v2606
    %v2608 = vrot.slane %v1242, %v2607
    %v2609 = vlaneseq
    %v2610 = vshrl.u32 %v2609, 7
    %v2611 = vsub.s32 %v1552, %v2610
    %v2612 = vrot.slane %v1243, %v2611
    %v2613 = vsel %vm1557, %v2612, %v2608
    %v2614 = vlaneseq
    %v2615 = vshrl.u32 %v2614, 7
    %v2616 = vsub.s32 %v1559, %v2615
    %v2617 = vrot.slane %v1244, %v2616
    %v2618 = vsel %vm1564, %v2617, %v2613
    %v2619 = vlaneseq
    %v2620 = vshrl.u32 %v2619, 7
    %v2621 = vsub.s32 %v1566, %v2620
    %v2622 = vrot.slane %v1245, %v2621
    %v2623 = vsel %vm1571, %v2622, %v2618
    %v2624 = vlaneseq
    %v2625 = vshrl.u32 %v2624, 7
    %v2626 = vsub.s32 %v1573, %v2625
    %v2627 = vrot.slane %v1246, %v2626
    %v2628 = vsel %vm1578, %v2627, %v2623
    %v2629 = vlaneseq
    %v2630 = vshrl.u32 %v2629, 7
    %v2631 = vsub.s32 %v1580, %v2630
    %v2632 = vrot.slane %v1247, %v2631
    %v2633 = vsel %vm1585, %v2632, %v2628
    %v2634 = vlaneseq
    %v2635 = vshrl.u32 %v2634, 7
    %v2636 = vsub.s32 %v1587, %v2635
    %v2637 = vrot.slane %v1248, %v2636
    %v2638 = vsel %vm1592, %v2637, %v2633
    %v2639 = vlaneseq
    %v2640 = vshrl.u32 %v2639, 7
    %v2641 = vsub.s32 %v1594, %v2640
    %v2642 = vrot.slane %v1249, %v2641
    %v2643 = vsel %vm1599, %v2642, %v2638
    %v2644 = vlaneseq
    %v2645 = vshrl.u32 %v2644, 7
    %v2646 = vsub.s32 %v1601, %v2645
    %v2647 = vrot.slane %v1250, %v2646
    %v2648 = vsel %vm1606, %v2647, %v2643
    %v2649 = vlaneseq
    %v2650 = vshrl.u32 %v2649, 7
    %v2651 = vsub.s32 %v1608, %v2650
    %v2652 = vrot.slane %v1251, %v2651
    %v2653 = vsel %vm1613, %v2652, %v2648
    %v2654 = vlaneseq
    %v2655 = vshrl.u32 %v2654, 7
    %v2656 = vsub.s32 %v1615, %v2655
    %v2657 = vrot.slane %v1252, %v2656
    %v2658 = vsel %vm1620, %v2657, %v2653
    %v2659 = vlaneseq
    %v2660 = vshrl.u32 %v2659, 7
    %v2661 = vsub.s32 %v1622, %v2660
    %v2662 = vrot.slane %v1253, %v2661
    %v2663 = vsel %vm1627, %v2662, %v2658
    %v2664 = vlaneseq
    %v2665 = vshrl.u32 %v2664, 7
    %v2666 = vsub.s32 %v1629, %v2665
    %v2667 = vrot.slane %v1254, %v2666
    %v2668 = vsel %vm1634, %v2667, %v2663
    %v2669 = vlaneseq
    %v2670 = vshrl.u32 %v2669, 7
    %v2671 = vsub.s32 %v1636, %v2670
    %v2672 = vrot.slane %v1255, %v2671
    %v2673 = vsel %vm1641, %v2672, %v2668
    %v2674 = vlaneseq
    %v2675 = vshrl.u32 %v2674, 7
    %v2676 = vsub.s32 %v1643, %v2675
    %v2677 = vrot.slane %v1256, %v2676
    %v2678 = vsel %vm1648, %v2677, %v2673
    %v2679 = vlaneseq
    %v2680 = vshrl.u32 %v2679, 7
    %v2681 = vsub.s32 %v1650, %v2680
    %v2682 = vrot.slane %v1257, %v2681
    %v2683 = vsel %vm1655, %v2682, %v2678
    %v2684 = vlaneseq
    %v2685 = vshrl.u32 %v2684, 7
    %v2686 = vsub.s32 %v1547, %v2685
    %v2687 = vrot.slane %v1258, %v2686
    %v2688 = vlaneseq
    %v2689 = vshrl.u32 %v2688, 7
    %v2690 = vsub.s32 %v1552, %v2689
    %v2691 = vrot.slane %v1259, %v2690
    %v2692 = vsel %vm1557, %v2691, %v2687
    %v2693 = vlaneseq
    %v2694 = vshrl.u32 %v2693, 7
    %v2695 = vsub.s32 %v1559, %v2694
    %v2696 = vrot.slane %v1260, %v2695
    %v2697 = vsel %vm1564, %v2696, %v2692
    %v2698 = vlaneseq
    %v2699 = vshrl.u32 %v2698, 7
    %v2700 = vsub.s32 %v1566, %v2699
    %v2701 = vrot.slane %v1261, %v2700
    %v2702 = vsel %vm1571, %v2701, %v2697
    %v2703 = vlaneseq
    %v2704 = vshrl.u32 %v2703, 7
    %v2705 = vsub.s32 %v1573, %v2704
    %v2706 = vrot.slane %v1262, %v2705
    %v2707 = vsel %vm1578, %v2706, %v2702
    %v2708 = vlaneseq
    %v2709 = vshrl.u32 %v2708, 7
    %v2710 = vsub.s32 %v1580, %v2709
    %v2711 = vrot.slane %v1263, %v2710
    %v2712 = vsel %vm1585, %v2711, %v2707
    %v2713 = vlaneseq
    %v2714 = vshrl.u32 %v2713, 7
    %v2715 = vsub.s32 %v1587, %v2714
    %v2716 = vrot.slane %v1264, %v2715
    %v2717 = vsel %vm1592, %v2716, %v2712
    %v2718 = vlaneseq
    %v2719 = vshrl.u32 %v2718, 7
    %v2720 = vsub.s32 %v1594, %v2719
    %v2721 = vrot.slane %v1265, %v2720
    %v2722 = vsel %vm1599, %v2721, %v2717
    %v2723 = vlaneseq
    %v2724 = vshrl.u32 %v2723, 7
    %v2725 = vsub.s32 %v1601, %v2724
    %v2726 = vrot.slane %v1266, %v2725
    %v2727 = vsel %vm1606, %v2726, %v2722
    %v2728 = vlaneseq
    %v2729 = vshrl.u32 %v2728, 7
    %v2730 = vsub.s32 %v1608, %v2729
    %v2731 = vrot.slane %v1267, %v2730
    %v2732 = vsel %vm1613, %v2731, %v2727
    %v2733 = vlaneseq
    %v2734 = vshrl.u32 %v2733, 7
    %v2735 = vsub.s32 %v1615, %v2734
    %v2736 = vrot.slane %v1268, %v2735
    %v2737 = vsel %vm1620, %v2736, %v2732
    %v2738 = vlaneseq
    %v2739 = vshrl.u32 %v2738, 7
    %v2740 = vsub.s32 %v1622, %v2739
    %v2741 = vrot.slane %v1269, %v2740
    %v2742 = vsel %vm1627, %v2741, %v2737
    %v2743 = vlaneseq
    %v2744 = vshrl.u32 %v2743, 7
    %v2745 = vsub.s32 %v1629, %v2744
    %v2746 = vrot.slane %v1270, %v2745
    %v2747 = vsel %vm1634, %v2746, %v2742
    %v2748 = vlaneseq
    %v2749 = vshrl.u32 %v2748, 7
    %v2750 = vsub.s32 %v1636, %v2749
    %v2751 = vrot.slane %v1271, %v2750
    %v2752 = vsel %vm1641, %v2751, %v2747
    %v2753 = vlaneseq
    %v2754 = vshrl.u32 %v2753, 7
    %v2755 = vsub.s32 %v1643, %v2754
    %v2756 = vrot.slane %v1272, %v2755
    %v2757 = vsel %vm1648, %v2756, %v2752
    %v2758 = vlaneseq
    %v2759 = vshrl.u32 %v2758, 7
    %v2760 = vsub.s32 %v1650, %v2759
    %v2761 = vrot.slane %v1273, %v2760
    %v2762 = vsel %vm1655, %v2761, %v2757
    %v2763 = vlaneseq
    %v2764 = vshrl.u32 %v2763, 7
    %v2765 = vsub.s32 %v1547, %v2764
    %v2766 = vrot.slane %v1274, %v2765
    %v2767 = vlaneseq
    %v2768 = vshrl.u32 %v2767, 7
    %v2769 = vsub.s32 %v1552, %v2768
    %v2770 = vrot.slane %v1275, %v2769
    %v2771 = vsel %vm1557, %v2770, %v2766
    %v2772 = vlaneseq
    %v2773 = vshrl.u32 %v2772, 7
    %v2774 = vsub.s32 %v1559, %v2773
    %v2775 = vrot.slane %v1276, %v2774
    %v2776 = vsel %vm1564, %v2775, %v2771
    %v2777 = vlaneseq
    %v2778 = vshrl.u32 %v2777, 7
    %v2779 = vsub.s32 %v1566, %v2778
    %v2780 = vrot.slane %v1277, %v2779
    %v2781 = vsel %vm1571, %v2780, %v2776
    %v2782 = vlaneseq
    %v2783 = vshrl.u32 %v2782, 7
    %v2784 = vsub.s32 %v1573, %v2783
    %v2785 = vrot.slane %v1278, %v2784
    %v2786 = vsel %vm1578, %v2785, %v2781
    %v2787 = vlaneseq
    %v2788 = vshrl.u32 %v2787, 7
    %v2789 = vsub.s32 %v1580, %v2788
    %v2790 = vrot.slane %v1279, %v2789
    %v2791 = vsel %vm1585, %v2790, %v2786
    %v2792 = vlaneseq
    %v2793 = vshrl.u32 %v2792, 7
    %v2794 = vsub.s32 %v1587, %v2793
    %v2795 = vrot.slane %v1280, %v2794
    %v2796 = vsel %vm1592, %v2795, %v2791
    %v2797 = vlaneseq
    %v2798 = vshrl.u32 %v2797, 7
    %v2799 = vsub.s32 %v1594, %v2798
    %v2800 = vrot.slane %v1281, %v2799
    %v2801 = vsel %vm1599, %v2800, %v2796
    %v2802 = vlaneseq
    %v2803 = vshrl.u32 %v2802, 7
    %v2804 = vsub.s32 %v1601, %v2803
    %v2805 = vrot.slane %v1282, %v2804
    %v2806 = vsel %vm1606, %v2805, %v2801
    %v2807 = vlaneseq
    %v2808 = vshrl.u32 %v2807, 7
    %v2809 = vsub.s32 %v1608, %v2808
    %v2810 = vrot.slane %v1283, %v2809
    %v2811 = vsel %vm1613, %v2810, %v2806
    %v2812 = vlaneseq
    %v2813 = vshrl.u32 %v2812, 7
    %v2814 = vsub.s32 %v1615, %v2813
    %v2815 = vrot.slane %v1284, %v2814
    %v2816 = vsel %vm1620, %v2815, %v2811
    %v2817 = vlaneseq
    %v2818 = vshrl.u32 %v2817, 7
    %v2819 = vsub.s32 %v1622, %v2818
    %v2820 = vrot.slane %v1285, %v2819
    %v2821 = vsel %vm1627, %v2820, %v2816
    %v2822 = vlaneseq
    %v2823 = vshrl.u32 %v2822, 7
    %v2824 = vsub.s32 %v1629, %v2823
    %v2825 = vrot.slane %v1286, %v2824
    %v2826 = vsel %vm1634, %v2825, %v2821
    %v2827 = vlaneseq
    %v2828 = vshrl.u32 %v2827, 7
    %v2829 = vsub.s32 %v1636, %v2828
    %v2830 = vrot.slane %v1287, %v2829
    %v2831 = vsel %vm1641, %v2830, %v2826
    %v2832 = vlaneseq
    %v2833 = vshrl.u32 %v2832, 7
    %v2834 = vsub.s32 %v1643, %v2833
    %v2835 = vrot.slane %v1288, %v2834
    %v2836 = vsel %vm1648, %v2835, %v2831
    %v2837 = vlaneseq
    %v2838 = vshrl.u32 %v2837, 7
    %v2839 = vsub.s32 %v1650, %v2838
    %v2840 = vrot.slane %v1289, %v2839
    %v2841 = vsel %vm1655, %v2840, %v2836
    %vm2842 = vcmask 1041409
    %v2843 = vsel %vm2842, %v1814, %v1656
    %vm2844 = vcmask 1042434
    %v2845 = vsel %vm2844, %v1972, %v2843
    %vm2846 = vcmask 1043459
    %v2847 = vsel %vm2846, %v2130, %v2845
    %vm2848 = vcmask 1044484
    %v2849 = vsel %vm2848, %v2288, %v2847
    %vm2850 = vcmask 1045509
    %v2851 = vsel %vm2850, %v2446, %v2849
    %vm2852 = vcmask 1046534
    %v2853 = vsel %vm2852, %v2604, %v2851
    %vm2854 = vcmask 1047559
    %v2855 = vsel %vm2854, %v2762, %v2853
    %v2856 = vsel %vm2842, %v1893, %v1735
    %v2857 = vsel %vm2844, %v2051, %v2856
    %v2858 = vsel %vm2846, %v2209, %v2857
    %v2859 = vsel %vm2848, %v2367, %v2858
    %v2860 = vsel %vm2850, %v2525, %v2859
    %v2861 = vsel %vm2852, %v2683, %v2860
    %v2862 = vsel %vm2854, %v2841, %v2861
    %2865 = vst [vmem:[#allocation2] sm:$0xff] %v2855
    %2866 = vst [vmem:[#allocation2 + $0x8] sm:$0xff] %v2862
    // Predicated region
    $region6: #{tpu_custom_call.1} parent=1 // pred_check
      _
    $region7: #{tpu_custom_call.1} parent=1 // pred_check_branch
      %2868 = sbr.rel (0) target = $region9
    $region8: #{tpu_custom_call.1} parent=1 // pred_region
      %s2870 = ssub.s32 256, 256
      %2871 = vsyncadd [#allocation3], %s2870
      %s2873 = sshll.u32 [#allocation2], 4
      %s2874 = int_to_ptr.vmem [resolvable:$true] %s2873
      %2876 = dma.vmem_to_hbm [thread:$0]  %s2874, 256, %s1, [#allocation3]
    $region9: #{tpu_custom_call.1} parent=1 // pred_fallthru
      _
    // Predicated region
    $region10: #{tpu_custom_call.1} parent=1 // pred_check
      _
    $region11: #{tpu_custom_call.1} parent=1 // pred_check_branch
      %2878 = sbr.rel (0) target = $region13
    $region12: #{tpu_custom_call.1} parent=1 // pred_region
      %2879 = dma.done [#allocation3], 256
    $region13: #{tpu_custom_call.1} parent=1 // pred_fallthru
      _
    %2880 = vsyncpa [#allocation3], 1

</llo_original>
